<compile_context>
chip_gen: v7x
topology: tpu7x:2x2x1
jax: 0.10.0
libtpu: 0.0.40
codegen_flags: <defaults>
</compile_context>

<pallas_src>
import functools

import jax
import jax.numpy as jnp
from jax import lax
from jax.experimental import pallas as pl
from jax.experimental.pallas import tpu as pltpu


def _round_up(x, m):
    return (x + m - 1) // m * m


def _vmem_budget_bytes():
    """Generation-aware VMEM budget: ~56 MiB on v7x (64 MiB/TC), ~100 MiB on v5e/v6e."""
    try:
        cap = int(pltpu.get_tpu_info().vmem_capacity_bytes)
    except Exception:
        cap = 64 * 1024 * 1024
    if cap <= 64 * 1024 * 1024:
        return 56 * 1024 * 1024          # leave headroom for Mosaic internal scratch
    return min(cap - 28 * 1024 * 1024, 100 * 1024 * 1024)


def _pick_vocab_tile(n_vocab, tn_target):
    """Lane-aligned vocab tile; prefer one that exactly divides the 128-padded vocab
    (no dead MXU columns, no post-kernel output slice copy)."""
    v128 = _round_up(n_vocab, 128)
    tn_target = max(128, _round_up(min(tn_target, v128), 128))
    cand = tn_target
    while cand >= max(128, tn_target // 4):
        if v128 % cand == 0:
            return cand, v128
        cand -= 128
    return tn_target, _round_up(n_vocab, tn_target)


# ---------------------------------------------------------------------------
# Parameter preparation (hoisted out of the per-step path)
# ---------------------------------------------------------------------------
def prepare_generator_params(weight, bias, *, compute_dtype=jnp.bfloat16, tn=1024):
    """Cast + pad the projection parameters ONCE.

    weight: (n_vocab, d_model) PyTorch-layout Linear weight (or the shared target
    embedding matrix when proj_share_weight=True). bias: (n_vocab,).
    """
    V, D = weight.shape
    tn_eff, V_pad = _pick_vocab_tile(V, tn)
    D_pad = _round_up(D, 128)
    w = weight.astype(compute_dtype)
    b = bias.astype(jnp.float32).reshape(1, V)
    if V_pad != V or D_pad != D:
        w = jnp.pad(w, ((0, V_pad - V), (0, D_pad - D)))
    if V_pad != V:
        b = jnp.pad(b, ((0, 0), (0, V_pad - V)))
    return dict(w=w, b=b, n_vocab=V, d_model=D, tn=tn_eff,
                compute_dtype=jnp.dtype(compute_dtype))


# ---------------------------------------------------------------------------
# vcb_proj: logits = x @ W^T + b   (W kept as (V, D), full-K resident weight tile)
# ---------------------------------------------------------------------------
def _vcb_proj_kernel(x_ref, w_ref, b_ref, o_ref, *, precision):
    # x_ref: (tm, D)  w_ref: (tn, D)  b_ref: (1, tn)  o_ref: (tm, tn)
    acc = lax.dot_general(
        x_ref[...], w_ref[...],
        dimension_numbers=(((1,), (1,)), ((), ())),   # contract d_model of both => x @ W^T
        preferred_element_type=jnp.float32,
        precision=precision)
    o_ref[...] = (acc + b_ref[...]).astype(o_ref.dtype)


def _vcb_proj_padded(x2d, w, b2d, *, tm, tn, out_dtype, precision, vmem_budget):
    M_pad, D_pad = x2d.shape
    V_pad = w.shape[0]
    grid = (V_pad // tn, M_pad // tm)   # vocab OUTER: W block index indep. of the inner m loop
    return pl.pallas_call(
        functools.partial(_vcb_proj_kernel, precision=precision),
        out_shape=jax.ShapeDtypeStruct((M_pad, V_pad), out_dtype),
        grid_spec=pltpu.PrefetchScalarGridSpec(
            num_scalar_prefetch=0,
            grid=grid,
            in_specs=[
                pl.BlockSpec((tm, D_pad), lambda n, m: (m, 0)),   # x row block (full-K)
                pl.BlockSpec((tn, D_pad), lambda n, m: (n, 0)),   # W tile (full-K, resident)
                pl.BlockSpec((1, tn), lambda n, m: (0, n)),       # bias tile
            ],
            out_specs=pl.BlockSpec((tm, tn), lambda n, m: (m, n)),
        ),
        compiler_params=pltpu.CompilerParams(
            dimension_semantics=("parallel", "parallel"),
            vmem_limit_bytes=int(vmem_budget),
        ),
    )(x2d, w, b2d)


# ---------------------------------------------------------------------------
# log-softmax over the vocab dim, chunked over V (two passes, online logsumexp)
# ---------------------------------------------------------------------------
def _row_lse_kernel(x_ref, lse_ref, m_sc, s_sc, *, n_valid, tv):
    v = pl.program_id(1)

    @pl.when(v == 0)
    def _():
        m_sc[...] = jnp.full_like(m_sc, -1e30)
        s_sc[...] = jnp.zeros_like(s_sc)

    x = x_ref[...].astype(jnp.float32)                        # (tm, tv)
    col = v * tv + lax.broadcasted_iota(jnp.int32, x.shape, 1)
    x = jnp.where(col < n_valid, x, jnp.float32(-1e30))       # mask padded vocab columns

    m_prev = m_sc[...]
    m_new = jnp.maximum(m_prev, jnp.max(x, axis=-1, keepdims=True))
    s_sc[...] = s_sc[...] * jnp.exp(m_prev - m_new) \
        + jnp.sum(jnp.exp(x - m_new), axis=-1, keepdims=True)
    m_sc[...] = m_new

    @pl.when(v == pl.num_programs(1) - 1)
    def _():
        lse_ref[...] = m_sc[...] + jnp.log(s_sc[...])


def _sub_lse_kernel(x_ref, lse_ref, o_ref):
    o_ref[...] = (x_ref[...].astype(jnp.float32) - lse_ref[...]).astype(o_ref.dtype)


def _log_softmax_padded(x2d, *, n_valid, tm, tv, vmem_budget, out_dtype=jnp.float32):
    """Row-wise log-softmax over the first n_valid columns of a padded (M_pad, V_pad)
    array, chunking the vocab axis so the working set fits VMEM on all TPU gens."""
    M_pad, V_pad = x2d.shape

    tm_eff = max(8, (min(tm, M_pad) // 8) * 8)
    while M_pad % tm_eff != 0:
        tm_eff -= 8
    tv_eff = min(_round_up(tv, 128), V_pad)
    while V_pad % tv_eff != 0:
        tv_eff -= 128

    grid = (M_pad // tm_eff, V_pad // tv_eff)

    # Pass 1: streaming max / sum-exp over vocab chunks -> per-row logsumexp.
    lse = pl.pallas_call(
        functools.partial(_row_lse_kernel, n_valid=n_valid, tv=tv_eff),
        out_shape=jax.ShapeDtypeStruct((M_pad, 1), jnp.float32),
        grid_spec=pltpu.PrefetchScalarGridSpec(
            num_scalar_prefetch=0,
            grid=grid,
            in_specs=[pl.BlockSpec((tm_eff, tv_eff), lambda m, v: (m, v))],
            out_specs=pl.BlockSpec((tm_eff, 1), lambda m, v: (m, 0)),
            scratch_shapes=[pltpu.VMEM((tm_eff, 1), jnp.float32),
                            pltpu.VMEM((tm_eff, 1), jnp.float32)],
        ),
        compiler_params=pltpu.CompilerParams(
            dimension_semantics=("parallel", "arbitrary"),
            vmem_limit_bytes=int(vmem_budget),
        ),
    )(x2d)

    # Pass 2: x - lse, lane-dense (tm, tv) output blocks.
    return pl.pallas_call(
        _sub_lse_kernel,
        out_shape=jax.ShapeDtypeStruct((M_pad, V_pad), out_dtype),
        grid_spec=pltpu.PrefetchScalarGridSpec(
            num_scalar_prefetch=0,
            grid=grid,
            in_specs=[pl.BlockSpec((tm_eff, tv_eff), lambda m, v: (m, v)),
                      pl.BlockSpec((tm_eff, 1), lambda m, v: (m, 0))],
            out_specs=pl.BlockSpec((tm_eff, tv_eff), lambda m, v: (m, v)),
        ),
        compiler_params=pltpu.CompilerParams(
            dimension_semantics=("parallel", "parallel"),
            vmem_limit_bytes=int(vmem_budget),
        ),
    )(x2d, lse)


# ---------------------------------------------------------------------------
# Generator.forward
# ---------------------------------------------------------------------------
def generator_forward(model_out, params, *, training=True, tm=512, tn=1024, tv=2048,
                      compute_dtype=jnp.bfloat16, logits_dtype=None,
                      f32_precision=lax.Precision.HIGHEST):
    """model_out: (B, S, D) f32.  params: dict from prepare_generator_params
    (preferred; hoists the weight cast/pad), or a raw (weight, bias) tuple."""
    if not isinstance(params, dict):
        weight, bias = params
        params = prepare_generator_params(weight, bias, compute_dtype=compute_dtype, tn=tn)

    w, b2d = params["w"], params["b"]
    V, D = params["n_vocab"], params["d_model"]
    tn_eff = params["tn"]
    cdtype = params["compute_dtype"]
    V_pad, D_pad = w.shape

    B, S, D_in = model_out.shape
    assert D_in == D, (D_in, D)
    M = B * S

    if logits_dtype is None:
        # Training: carry intermediate logits in the compute dtype (bf16 halves the
        # HBM-bound log-softmax traffic). Inference: return f32 logits (module output).
        logits_dtype = cdtype if training else jnp.dtype(jnp.float32)
    logits_dtype = jnp.dtype(logits_dtype)

    budget = _vmem_budget_bytes()
    cde = cdtype.itemsize
    ode = logits_dtype.itemsize
    tm_eff = max(8, (min(tm, _round_up(M, 8)) // 8) * 8)

    def _footprint(tm_, tn_):
        return (2 * tm_ * D_pad * cde          # x blocks (double buffered)
                + 2 * tn_ * D_pad * cde        # resident weight tile (double buffered)
                + 2 * tm_ * tn_ * ode          # output blocks
                + tm_ * tn_ * 4                # f32 matmul result
                + 2 * 8 * tn_ * 4)             # bias

    while _footprint(tm_eff, tn_eff) > budget and tm_eff > 128:
        tm_eff = _round_up(tm_eff // 2, 8)
    while _footprint(tm_eff, tn_eff) > budget and tn_eff > 128:
        tn_eff = max(128, (tn_eff // 2) // 128 * 128)
    if V_pad % tn_eff != 0:                    # rare fallback after shrinking tn
        new_v = _round_up(V_pad, tn_eff)
        w = jnp.pad(w, ((0, new_v - V_pad), (0, 0)))
        b2d = jnp.pad(b2d, ((0, 0), (0, new_v - V_pad)))
        V_pad = new_v

    M_pad = _round_up(M, tm_eff)
    x2d = model_out.reshape(M, D)
    if x2d.dtype != cdtype:
        x2d = x2d.astype(cdtype)
    if M_pad != M or D_pad != D:
        x2d = jnp.pad(x2d, ((0, M_pad - M), (0, D_pad - D)))

    # f32 path is test/debug only; lax.Precision.HIGH is ~2x faster if ever needed.
    precision = f32_precision if cdtype == jnp.dtype(jnp.float32) else None

    logits2d = _vcb_proj_padded(x2d, w, b2d, tm=tm_eff, tn=tn_eff,
                                out_dtype=logits_dtype, precision=precision,
                                vmem_budget=budget)

    if training:
        # TODO(synk): MyLogSoftmax is not defined in the spec; standard log_softmax
        # over the vocab dim is used here.
        out2d = _log_softmax_padded(logits2d, n_valid=V, tm=tm_eff, tv=tv,
                                    vmem_budget=budget, out_dtype=jnp.float32)
    else:
        out2d = logits2d
        if out2d.dtype != jnp.float32:
            out2d = out2d.astype(jnp.float32)
    # TODO(synk): pred_map's Gumbel-noise injection is inference-time sampling noise
    # outside forward() and is not implemented.
    return out2d[:M, :V].reshape(B, S, V)


def init_generator_params(key, d_model, n_vocab):
    # Matches nn.init.normal_(weight, mean=0, std=d_model**-0.5); bias = zeros.
    # (proj_share_weight=True would simply pass the embedding matrix as `weight`.)
    w_key, _ = jax.random.split(key)
    weight = jax.random.normal(w_key, (n_vocab, d_model), dtype=jnp.float32) \
             * (d_model ** -0.5)
    bias = jnp.zeros((n_vocab,), dtype=jnp.float32)
    return weight, bias


if __name__ == "__main__":
    key = jax.random.PRNGKey(0)
    k_ctx, k_param = jax.random.split(key)

    batch, seq, d_model, n_vocab = 2, 12, 256, 500   # non-multiples exercise padding
    model_out = jax.random.normal(k_ctx, (batch, seq, d_model), dtype=jnp.float32)
    weight, bias = init_generator_params(k_param, d_model, n_vocab)

    # Plain-JAX reference (same semantics as nn.Linear + log_softmax).
    logits_ref = model_out @ weight.T + bias
    logprobs_ref = jax.nn.log_softmax(logits_ref, axis=-1)

    # 1) training=True path, f32 operands (strict-ish check).
    out_train = generator_forward(model_out, (weight, bias), training=True,
                                  compute_dtype=jnp.float32)
    out_train = jax.block_until_ready(out_train)
    assert out_train.shape == (batch, seq, n_vocab)
    assert jnp.allclose(out_train, logprobs_ref, atol=2e-2, rtol=1e-3)

    # 2) training=False path, bf16 weights prepared ONCE (hoisted cast/pad).
    prepared_bf16 = prepare_generator_params(weight, bias, compute_dtype=jnp.bfloat16)
    out_infer = generator_forward(model_out, prepared_bf16, training=False)
    out_infer = jax.block_until_ready(out_infer)
    assert out_infer.shape == (batch, seq, n_vocab)
    assert jnp.allclose(out_infer, logits_ref, atol=5e-2, rtol=1e-2)

    # 3) training path, bf16 weights + bf16 logits carried into the chunked log-softmax.
    out_train_bf16 = generator_forward(model_out, prepared_bf16, training=True)
    out_train_bf16 = jax.block_until_ready(out_train_bf16)
    assert out_train_bf16.shape == (batch, seq, n_vocab)
    assert jnp.allclose(out_train_bf16, logprobs_ref, atol=1e-1, rtol=5e-2)

    # 4) small tiles: multi-step grid on both matmul axes (grid=(4,3)) and a 4-chunk
    #    online logsumexp (tv=128 over V_pad=512), f32 for a strict check.
    out_tiled = generator_forward(model_out, (weight, bias), training=True,
                                  compute_dtype=jnp.float32, tm=8, tn=128, tv=128)
    out_tiled = jax.block_until_ready(out_tiled)
    assert jnp.allclose(out_tiled, logprobs_ref, atol=2e-2, rtol=1e-3)

    print("KERNEL_OK")
</pallas_src>

<mosaic_0001>
module attributes {stable_mosaic.version = 11 : i64} {
  func.func @_vcb_proj_kernel(%arg0: i32, %arg1: i32, %arg2: memref<24x256xf32, #tpu.memory_space<vmem>>, %arg3: memref<512x256xf32, #tpu.memory_space<vmem>>, %arg4: memref<1x512xf32, #tpu.memory_space<vmem>>, %arg5: memref<24x512xf32, #tpu.memory_space<vmem>>) attributes {dimension_semantics = [#tpu.dimension_semantics<parallel>, #tpu.dimension_semantics<parallel>], iteration_bounds = array<i64: 1, 1>, scalar_prefetch = 0 : i64, scratch_operands = 0 : i64, tpu.core_type = #tpu.core_type<tc>, window_params = [{transform_indices = @transform_0, window_bounds = array<i64: 24, 256>}, {transform_indices = @transform_1, window_bounds = array<i64: 512, 256>}, {transform_indices = @transform_2, window_bounds = array<i64: 1, 512>}, {transform_indices = @transform_3, window_bounds = array<i64: 24, 512>}]} {
    %c0 = arith.constant 0 : index
    %c0_0 = arith.constant 0 : index
    %0 = vector.load %arg2[%c0, %c0_0] : memref<24x256xf32, #tpu.memory_space<vmem>>, vector<24x256xf32>
    %c0_1 = arith.constant 0 : index
    %c0_2 = arith.constant 0 : index
    %1 = vector.load %arg3[%c0_1, %c0_2] : memref<512x256xf32, #tpu.memory_space<vmem>>, vector<512x256xf32>
    %cst = arith.constant dense<0.000000e+00> : vector<24x512xf32>
    %2 = tpu.matmul %0, %1, %cst {dimension_numbers = #tpu.dot_dimension_numbers<[1], [1], [0], [0], [0, 0, 1, 0], [], []>, precision = #tpu.contract_precision<fp32>} : vector<24x256xf32>, vector<512x256xf32>, vector<24x512xf32> -> vector<24x512xf32>
    %c0_3 = arith.constant 0 : index
    %c0_4 = arith.constant 0 : index
    %3 = vector.load %arg4[%c0_3, %c0_4] : memref<1x512xf32, #tpu.memory_space<vmem>>, vector<1x512xf32>
    %4 = vector.broadcast %3 : vector<1x512xf32> to vector<24x512xf32>
    %5 = arith.addf %2, %4 : vector<24x512xf32>
    %c0_5 = arith.constant 0 : index
    %c0_6 = arith.constant 0 : index
    %6 = vector.load %arg5[%c0_5, %c0_6] : memref<24x512xf32, #tpu.memory_space<vmem>>, vector<24x512xf32>
    tpu.vector_store %arg5[%c0_5, %c0_6], %5 {strides = array<i32>} : memref<24x512xf32, #tpu.memory_space<vmem>>, vector<24x512xf32>,
    return
  }
  func.func @transform_0(%arg0: i32, %arg1: i32) -> (i32, i32) {
    %c0_i32 = arith.constant 0 : i32
    %c0_i32_0 = arith.constant 0 : i32
    return %arg1, %c0_i32 : i32, i32
  }
  func.func @transform_1(%arg0: i32, %arg1: i32) -> (i32, i32) {
    %c0_i32 = arith.constant 0 : i32
    %c0_i32_0 = arith.constant 0 : i32
    return %arg0, %c0_i32 : i32, i32
  }
  func.func @transform_2(%arg0: i32, %arg1: i32) -> (i32, i32) {
    %c0_i32 = arith.constant 0 : i32
    %c0_i32_0 = arith.constant 0 : i32
    return %c0_i32, %arg0 : i32, i32
  }
  func.func @transform_3(%arg0: i32, %arg1: i32) -> (i32, i32) {
    %c0_i32 = arith.constant 0 : i32
    return %arg1, %arg0 : i32, i32
  }
}

</mosaic_0001>

<llo_original>
// kernel: tpu_custom_call.1
$region0: #{tpu_custom_call.1}
  #allocation0 [shape = 'u32[]', space=smem, size = 0x4, offset = 0x4, fixed_abs, tag = 'smem constant byte address 0x4 - core index']
  #allocation1 [shape = 'u32[144,128]{1,0:T(1,128)}', space=vmem, size = 0x12000, scoped, tag = 'internal scratch']
  %s0 = inlined_call_operand.hbm [shape: f32[24,256], index: 0, kind: input, shape index: {}]
  %s1 = inlined_call_operand.hbm [shape: f32[512,256], index: 1, kind: input, shape index: {}]
  %s2 = inlined_call_operand.vmem [shape: f32[1,512], index: 2, kind: input, shape index: {}]
  %s3 = inlined_call_operand.hbm [shape: f32[24,512], index: 3, kind: output, shape index: {}]
  %s4 = sld [smem:[#allocation0]]
  $region30: #{tpu_custom_call.1} parent=0
    _
  %s6 = ssub.s32 1, %s4
  %s7 = scalar_select 0, %s6, %s4
  $region1: #{tpu_custom_call.1} parent=0
    #allocation2 [shape = 'u8[24576]{0}', space=vmem, size = 0x6000, scoped, tag = 'input window, operand 0, single buffered']
    #allocation3 [shape = 's32[1]{0}', space=sflag, size = 0x4, scoped, tag = 'scoped memory for tpu_custom_call.1']
    #allocation4 [shape = 's32[1]{0}', space=sflag, size = 0x4, scoped, tag = 'scoped memory for tpu_custom_call.1']
    #allocation5 [shape = 'u8[524288]{0}', space=vmem, size = 0x80000, scoped, tag = 'input window, operand 1, single buffered']
    #allocation6 [shape = 's32[1]{0}', space=sflag, size = 0x4, scoped, tag = 'scoped memory for tpu_custom_call.1']
    #allocation7 [shape = 'u8[49152]{0}', space=vmem, size = 0xc000, scoped, tag = 'output window, operand 0, single buffered']
    %8 = vsyncpa [#allocation3], 0
    %9 = vsyncpa [#allocation6], 0
    %10 = vsyncpa [#allocation4], 0
    // Predicated region
    $region2: #{tpu_custom_call.1} parent=1 // pred_check
      _
    $region3: #{tpu_custom_call.1} parent=1 // pred_check_branch
      %12 = sbr.rel (0) target = $region5
    $region4: #{tpu_custom_call.1} parent=1 // pred_region
      %s14 = ssub.s32 768, 768
      %15 = vsyncadd [#allocation3], %s14
      %s16 = sshll.u32 [#allocation2], 4
      %s17 = int_to_ptr.vmem [resolvable:$true] %s16
      %22 = dma.hbm_to_vmem [thread:$0]  %s0, 768, %s17, [#allocation3], 256, 256, 16
    $region5: #{tpu_custom_call.1} parent=1 // pred_fallthru
      _
    // Predicated region
    $region6: #{tpu_custom_call.1} parent=1 // pred_check
      _
    $region7: #{tpu_custom_call.1} parent=1 // pred_check_branch
      %24 = sbr.rel (0) target = $region9
    $region8: #{tpu_custom_call.1} parent=1 // pred_region
      %s26 = ssub.s32 16384, 16384
      %27 = vsyncadd [#allocation6], %s26
      %s28 = sshll.u32 [#allocation5], 4
      %s29 = int_to_ptr.vmem [resolvable:$true] %s28
      %34 = dma.hbm_to_vmem [thread:$0]  %s1, 16384, %s29, [#allocation6], 256, 256, 16
    $region9: #{tpu_custom_call.1} parent=1 // pred_fallthru
      _
    // Predicated region
    $region10: #{tpu_custom_call.1} parent=1 // pred_check
      _
    $region11: #{tpu_custom_call.1} parent=1 // pred_check_branch
      %36 = sbr.rel (0) target = $region13
    $region12: #{tpu_custom_call.1} parent=1 // pred_region
      _
    $region13: #{tpu_custom_call.1} parent=1 // pred_fallthru
      _
    // Predicated region
    $region14: #{tpu_custom_call.1} parent=1 // pred_check
      _
    $region15: #{tpu_custom_call.1} parent=1 // pred_check_branch
      %38 = sbr.rel (0) target = $region17
    $region16: #{tpu_custom_call.1} parent=1 // pred_region
      %39 = dma.done [#allocation3], 768
    $region17: #{tpu_custom_call.1} parent=1 // pred_fallthru
      _
    // Predicated region
    $region18: #{tpu_custom_call.1} parent=1 // pred_check
      _
    $region19: #{tpu_custom_call.1} parent=1 // pred_check_branch
      %41 = sbr.rel (0) target = $region21
    $region20: #{tpu_custom_call.1} parent=1 // pred_region
      %42 = dma.done [#allocation6], 16384
    $region21: #{tpu_custom_call.1} parent=1 // pred_fallthru
      _
    %v43 = vld [vmem:[#allocation2] sm:$0xff]
    %v44 = vld [vmem:[#allocation2 + $0x8] sm:$0xff]
    %v45 = vld [vmem:[#allocation2 + $0x10] sm:$0xff]
    %v46 = vld [vmem:[#allocation2 + $0x18] sm:$0xff]
    %v47 = vld [vmem:[#allocation2 + $0x20] sm:$0xff]
    %v48 = vld [vmem:[#allocation2 + $0x28] sm:$0xff]
    %v49 = vld [vmem:[#allocation5] sm:$0xff]
    %v50 = vld [vmem:[#allocation5 + $0x8] sm:$0xff]
    %v51 = vld [vmem:[#allocation5 + $0x10] sm:$0xff]
    %v52 = vld [vmem:[#allocation5 + $0x18] sm:$0xff]
    %v53 = vld [vmem:[#allocation5 + $0x20] sm:$0xff]
    %v54 = vld [vmem:[#allocation5 + $0x28] sm:$0xff]
    %v55 = vld [vmem:[#allocation5 + $0x30] sm:$0xff]
    %v56 = vld [vmem:[#allocation5 + $0x38] sm:$0xff]
    %v57 = vld [vmem:[#allocation5 + $0x40] sm:$0xff]
    %v58 = vld [vmem:[#allocation5 + $0x48] sm:$0xff]
    %v59 = vld [vmem:[#allocation5 + $0x50] sm:$0xff]
    %v60 = vld [vmem:[#allocation5 + $0x58] sm:$0xff]
    %v61 = vld [vmem:[#allocation5 + $0x60] sm:$0xff]
    %v62 = vld [vmem:[#allocation5 + $0x68] sm:$0xff]
    %v63 = vld [vmem:[#allocation5 + $0x70] sm:$0xff]
    %v64 = vld [vmem:[#allocation5 + $0x78] sm:$0xff]
    %v65 = vld [vmem:[#allocation5 + $0x80] sm:$0xff]
    %v66 = vld [vmem:[#allocation5 + $0x88] sm:$0xff]
    %v67 = vld [vmem:[#allocation5 + $0x90] sm:$0xff]
    %v68 = vld [vmem:[#allocation5 + $0x98] sm:$0xff]
    %v69 = vld [vmem:[#allocation5 + $0xa0] sm:$0xff]
    %v70 = vld [vmem:[#allocation5 + $0xa8] sm:$0xff]
    %v71 = vld [vmem:[#allocation5 + $0xb0] sm:$0xff]
    %v72 = vld [vmem:[#allocation5 + $0xb8] sm:$0xff]
    %v73 = vld [vmem:[#allocation5 + $0xc0] sm:$0xff]
    %v74 = vld [vmem:[#allocation5 + $0xc8] sm:$0xff]
    %v75 = vld [vmem:[#allocation5 + $0xd0] sm:$0xff]
    %v76 = vld [vmem:[#allocation5 + $0xd8] sm:$0xff]
    %v77 = vld [vmem:[#allocation5 + $0xe0] sm:$0xff]
    %v78 = vld [vmem:[#allocation5 + $0xe8] sm:$0xff]
    %v79 = vld [vmem:[#allocation5 + $0xf0] sm:$0xff]
    %v80 = vld [vmem:[#allocation5 + $0xf8] sm:$0xff]
    %v81 = vld [vmem:[#allocation5 + $0x100] sm:$0xff]
    %v82 = vld [vmem:[#allocation5 + $0x108] sm:$0xff]
    %v83 = vld [vmem:[#allocation5 + $0x110] sm:$0xff]
    %v84 = vld [vmem:[#allocation5 + $0x118] sm:$0xff]
    %v85 = vld [vmem:[#allocation5 + $0x120] sm:$0xff]
    %v86 = vld [vmem:[#allocation5 + $0x128] sm:$0xff]
    %v87 = vld [vmem:[#allocation5 + $0x130] sm:$0xff]
    %v88 = vld [vmem:[#allocation5 + $0x138] sm:$0xff]
    %v89 = vld [vmem:[#allocation5 + $0x140] sm:$0xff]
    %v90 = vld [vmem:[#allocation5 + $0x148] sm:$0xff]
    %v91 = vld [vmem:[#allocation5 + $0x150] sm:$0xff]
    %v92 = vld [vmem:[#allocation5 + $0x158] sm:$0xff]
    %v93 = vld [vmem:[#allocation5 + $0x160] sm:$0xff]
    %v94 = vld [vmem:[#allocation5 + $0x168] sm:$0xff]
    %v95 = vld [vmem:[#allocation5 + $0x170] sm:$0xff]
    %v96 = vld [vmem:[#allocation5 + $0x178] sm:$0xff]
    %v97 = vld [vmem:[#allocation5 + $0x180] sm:$0xff]
    %v98 = vld [vmem:[#allocation5 + $0x188] sm:$0xff]
    %v99 = vld [vmem:[#allocation5 + $0x190] sm:$0xff]
    %v100 = vld [vmem:[#allocation5 + $0x198] sm:$0xff]
    %v101 = vld [vmem:[#allocation5 + $0x1a0] sm:$0xff]
    %v102 = vld [vmem:[#allocation5 + $0x1a8] sm:$0xff]
    %v103 = vld [vmem:[#allocation5 + $0x1b0] sm:$0xff]
    %v104 = vld [vmem:[#allocation5 + $0x1b8] sm:$0xff]
    %v105 = vld [vmem:[#allocation5 + $0x1c0] sm:$0xff]
    %v106 = vld [vmem:[#allocation5 + $0x1c8] sm:$0xff]
    %v107 = vld [vmem:[#allocation5 + $0x1d0] sm:$0xff]
    %v108 = vld [vmem:[#allocation5 + $0x1d8] sm:$0xff]
    %v109 = vld [vmem:[#allocation5 + $0x1e0] sm:$0xff]
    %v110 = vld [vmem:[#allocation5 + $0x1e8] sm:$0xff]
    %v111 = vld [vmem:[#allocation5 + $0x1f0] sm:$0xff]
    %v112 = vld [vmem:[#allocation5 + $0x1f8] sm:$0xff]
    %v113 = vld [vmem:[#allocation5 + $0x200] sm:$0xff]
    %v114 = vld [vmem:[#allocation5 + $0x208] sm:$0xff]
    %v115 = vld [vmem:[#allocation5 + $0x210] sm:$0xff]
    %v116 = vld [vmem:[#allocation5 + $0x218] sm:$0xff]
    %v117 = vld [vmem:[#allocation5 + $0x220] sm:$0xff]
    %v118 = vld [vmem:[#allocation5 + $0x228] sm:$0xff]
    %v119 = vld [vmem:[#allocation5 + $0x230] sm:$0xff]
    %v120 = vld [vmem:[#allocation5 + $0x238] sm:$0xff]
    %v121 = vld [vmem:[#allocation5 + $0x240] sm:$0xff]
    %v122 = vld [vmem:[#allocation5 + $0x248] sm:$0xff]
    %v123 = vld [vmem:[#allocation5 + $0x250] sm:$0xff]
    %v124 = vld [vmem:[#allocation5 + $0x258] sm:$0xff]
    %v125 = vld [vmem:[#allocation5 + $0x260] sm:$0xff]
    %v126 = vld [vmem:[#allocation5 + $0x268] sm:$0xff]
    %v127 = vld [vmem:[#allocation5 + $0x270] sm:$0xff]
    %v128 = vld [vmem:[#allocation5 + $0x278] sm:$0xff]
    %v129 = vld [vmem:[#allocation5 + $0x280] sm:$0xff]
    %v130 = vld [vmem:[#allocation5 + $0x288] sm:$0xff]
    %v131 = vld [vmem:[#allocation5 + $0x290] sm:$0xff]
    %v132 = vld [vmem:[#allocation5 + $0x298] sm:$0xff]
    %v133 = vld [vmem:[#allocation5 + $0x2a0] sm:$0xff]
    %v134 = vld [vmem:[#allocation5 + $0x2a8] sm:$0xff]
    %v135 = vld [vmem:[#allocation5 + $0x2b0] sm:$0xff]
    %v136 = vld [vmem:[#allocation5 + $0x2b8] sm:$0xff]
    %v137 = vld [vmem:[#allocation5 + $0x2c0] sm:$0xff]
    %v138 = vld [vmem:[#allocation5 + $0x2c8] sm:$0xff]
    %v139 = vld [vmem:[#allocation5 + $0x2d0] sm:$0xff]
    %v140 = vld [vmem:[#allocation5 + $0x2d8] sm:$0xff]
    %v141 = vld [vmem:[#allocation5 + $0x2e0] sm:$0xff]
    %v142 = vld [vmem:[#allocation5 + $0x2e8] sm:$0xff]
    %v143 = vld [vmem:[#allocation5 + $0x2f0] sm:$0xff]
    %v144 = vld [vmem:[#allocation5 + $0x2f8] sm:$0xff]
    %v145 = vld [vmem:[#allocation5 + $0x300] sm:$0xff]
    %v146 = vld [vmem:[#allocation5 + $0x308] sm:$0xff]
    %v147 = vld [vmem:[#allocation5 + $0x310] sm:$0xff]
    %v148 = vld [vmem:[#allocation5 + $0x318] sm:$0xff]
    %v149 = vld [vmem:[#allocation5 + $0x320] sm:$0xff]
    %v150 = vld [vmem:[#allocation5 + $0x328] sm:$0xff]
    %v151 = vld [vmem:[#allocation5 + $0x330] sm:$0xff]
    %v152 = vld [vmem:[#allocation5 + $0x338] sm:$0xff]
    %v153 = vld [vmem:[#allocation5 + $0x340] sm:$0xff]
    %v154 = vld [vmem:[#allocation5 + $0x348] sm:$0xff]
    %v155 = vld [vmem:[#allocation5 + $0x350] sm:$0xff]
    %v156 = vld [vmem:[#allocation5 + $0x358] sm:$0xff]
    %v157 = vld [vmem:[#allocation5 + $0x360] sm:$0xff]
    %v158 = vld [vmem:[#allocation5 + $0x368] sm:$0xff]
    %v159 = vld [vmem:[#allocation5 + $0x370] sm:$0xff]
    %v160 = vld [vmem:[#allocation5 + $0x378] sm:$0xff]
    %v161 = vld [vmem:[#allocation5 + $0x380] sm:$0xff]
    %v162 = vld [vmem:[#allocation5 + $0x388] sm:$0xff]
    %v163 = vld [vmem:[#allocation5 + $0x390] sm:$0xff]
    %v164 = vld [vmem:[#allocation5 + $0x398] sm:$0xff]
    %v165 = vld [vmem:[#allocation5 + $0x3a0] sm:$0xff]
    %v166 = vld [vmem:[#allocation5 + $0x3a8] sm:$0xff]
    %v167 = vld [vmem:[#allocation5 + $0x3b0] sm:$0xff]
    %v168 = vld [vmem:[#allocation5 + $0x3b8] sm:$0xff]
    %v169 = vld [vmem:[#allocation5 + $0x3c0] sm:$0xff]
    %v170 = vld [vmem:[#allocation5 + $0x3c8] sm:$0xff]
    %v171 = vld [vmem:[#allocation5 + $0x3d0] sm:$0xff]
    %v172 = vld [vmem:[#allocation5 + $0x3d8] sm:$0xff]
    %v173 = vld [vmem:[#allocation5 + $0x3e0] sm:$0xff]
    %v174 = vld [vmem:[#allocation5 + $0x3e8] sm:$0xff]
    %v175 = vld [vmem:[#allocation5 + $0x3f0] sm:$0xff]
    %v176 = vld [vmem:[#allocation5 + $0x3f8] sm:$0xff]
    %v177 = vld [vmem:[%s2] sm:$0xf]
    %v179 = vlaneseq
    %v180 = vshrl.u32 %v179, 7
    %v181 = vsub.s32 0, %v180
    %v182 = vrot.slane %v177, %v181
    %v183 = vlaneseq
    %v184 = vshrl.u32 %v183, 7
    %v185 = vsub.s32 1, %v184
    %v186 = vrot.slane %v177, %v185
    %v187 = vlaneseq
    %v188 = vshrl.u32 %v187, 7
    %v189 = vsub.s32 2, %v188
    %v190 = vrot.slane %v177, %v189
    %v191 = vlaneseq
    %v192 = vshrl.u32 %v191, 7
    %v193 = vsub.s32 3, %v192
    %v194 = vrot.slane %v177, %v193
    %v199 = vand.u32 %v50, 4294901760
    %200 = vmatprep.subr.mxu0 %v199
    %v201 = vand.u32 %v49, 4294901760
    %202 = vmatpush1.xpose.msra.mxu0 %v201
    %v203 = vand.u32 %v52, 4294901760
    %204 = vmatprep.subr.mxu0 %v203
    %v205 = vand.u32 %v51, 4294901760
    %206 = vmatpush1.xpose.msra.mxu0 %v205
    %v207 = vand.u32 %v54, 4294901760
    %208 = vmatprep.subr.mxu0 %v207
    %v209 = vand.u32 %v53, 4294901760
    %210 = vmatpush1.xpose.msra.mxu0 %v209
    %v211 = vand.u32 %v56, 4294901760
    %212 = vmatprep.subr.mxu0 %v211
    %v213 = vand.u32 %v55, 4294901760
    %214 = vmatpush1.xpose.msra.mxu0 %v213
    %v215 = vand.u32 %v58, 4294901760
    %216 = vmatprep.subr.mxu0 %v215
    %v217 = vand.u32 %v57, 4294901760
    %218 = vmatpush1.xpose.msra.mxu0 %v217
    %v219 = vand.u32 %v60, 4294901760
    %220 = vmatprep.subr.mxu0 %v219
    %v221 = vand.u32 %v59, 4294901760
    %222 = vmatpush1.xpose.msra.mxu0 %v221
    %v223 = vand.u32 %v62, 4294901760
    %224 = vmatprep.subr.mxu0 %v223
    %v225 = vand.u32 %v61, 4294901760
    %226 = vmatpush1.xpose.msra.mxu0 %v225
    %v227 = vand.u32 %v64, 4294901760
    %228 = vmatprep.subr.mxu0 %v227
    %v229 = vand.u32 %v63, 4294901760
    %230 = vmatpush1.xpose.msra.mxu0 %v229
    %v231 = vand.u32 %v66, 4294901760
    %232 = vmatprep.subr.mxu0 %v231
    %v233 = vand.u32 %v65, 4294901760
    %234 = vmatpush1.xpose.msra.mxu0 %v233
    %v235 = vand.u32 %v68, 4294901760
    %236 = vmatprep.subr.mxu0 %v235
    %v237 = vand.u32 %v67, 4294901760
    %238 = vmatpush1.xpose.msra.mxu0 %v237
    %v239 = vand.u32 %v70, 4294901760
    %240 = vmatprep.subr.mxu0 %v239
    %v241 = vand.u32 %v69, 4294901760
    %242 = vmatpush1.xpose.msra.mxu0 %v241
    %v243 = vand.u32 %v72, 4294901760
    %244 = vmatprep.subr.mxu0 %v243
    %v245 = vand.u32 %v71, 4294901760
    %246 = vmatpush1.xpose.msra.mxu0 %v245
    %v247 = vand.u32 %v74, 4294901760
    %248 = vmatprep.subr.mxu0 %v247
    %v249 = vand.u32 %v73, 4294901760
    %250 = vmatpush1.xpose.msra.mxu0 %v249
    %v251 = vand.u32 %v76, 4294901760
    %252 = vmatprep.subr.mxu0 %v251
    %v253 = vand.u32 %v75, 4294901760
    %254 = vmatpush1.xpose.msra.mxu0 %v253
    %v255 = vand.u32 %v78, 4294901760
    %256 = vmatprep.subr.mxu0 %v255
    %v257 = vand.u32 %v77, 4294901760
    %258 = vmatpush1.xpose.msra.mxu0 %v257
    %v259 = vand.u32 %v80, 4294901760
    %260 = vmatprep.subr.mxu0 %v259
    %v261 = vand.u32 %v79, 4294901760
    %262 = vmatpush1.xpose.msra.mxu0 %v261
    %v263 = vand.u32 %v82, 4294901760
    %264 = vmatprep.subr.mxu0 %v263
    %v265 = vand.u32 %v81, 4294901760
    %266 = vmatpush1.xpose.msra.mxu0 %v265
    %v267 = vand.u32 %v84, 4294901760
    %268 = vmatprep.subr.mxu0 %v267
    %v269 = vand.u32 %v83, 4294901760
    %270 = vmatpush1.xpose.msra.mxu0 %v269
    %v271 = vand.u32 %v86, 4294901760
    %272 = vmatprep.subr.mxu0 %v271
    %v273 = vand.u32 %v85, 4294901760
    %274 = vmatpush1.xpose.msra.mxu0 %v273
    %v275 = vand.u32 %v88, 4294901760
    %276 = vmatprep.subr.mxu0 %v275
    %v277 = vand.u32 %v87, 4294901760
    %278 = vmatpush1.xpose.msra.mxu0 %v277
    %v279 = vand.u32 %v90, 4294901760
    %280 = vmatprep.subr.mxu0 %v279
    %v281 = vand.u32 %v89, 4294901760
    %282 = vmatpush1.xpose.msra.mxu0 %v281
    %v283 = vand.u32 %v92, 4294901760
    %284 = vmatprep.subr.mxu0 %v283
    %v285 = vand.u32 %v91, 4294901760
    %286 = vmatpush1.xpose.msra.mxu0 %v285
    %v287 = vand.u32 %v94, 4294901760
    %288 = vmatprep.subr.mxu0 %v287
    %v289 = vand.u32 %v93, 4294901760
    %290 = vmatpush1.xpose.msra.mxu0 %v289
    %v291 = vand.u32 %v96, 4294901760
    %292 = vmatprep.subr.mxu0 %v291
    %v293 = vand.u32 %v95, 4294901760
    %294 = vmatpush1.xpose.msra.mxu0 %v293
    %v295 = vand.u32 %v98, 4294901760
    %296 = vmatprep.subr.mxu0 %v295
    %v297 = vand.u32 %v97, 4294901760
    %298 = vmatpush1.xpose.msra.mxu0 %v297
    %v299 = vand.u32 %v100, 4294901760
    %300 = vmatprep.subr.mxu0 %v299
    %v301 = vand.u32 %v99, 4294901760
    %302 = vmatpush1.xpose.msra.mxu0 %v301
    %v303 = vand.u32 %v102, 4294901760
    %304 = vmatprep.subr.mxu0 %v303
    %v305 = vand.u32 %v101, 4294901760
    %306 = vmatpush1.xpose.msra.mxu0 %v305
    %v307 = vand.u32 %v104, 4294901760
    %308 = vmatprep.subr.mxu0 %v307
    %v309 = vand.u32 %v103, 4294901760
    %310 = vmatpush1.xpose.msra.mxu0 %v309
    %v311 = vand.u32 %v106, 4294901760
    %312 = vmatprep.subr.mxu0 %v311
    %v313 = vand.u32 %v105, 4294901760
    %314 = vmatpush1.xpose.msra.mxu0 %v313
    %v315 = vand.u32 %v108, 4294901760
    %316 = vmatprep.subr.mxu0 %v315
    %v317 = vand.u32 %v107, 4294901760
    %318 = vmatpush1.xpose.msra.mxu0 %v317
    %v319 = vand.u32 %v110, 4294901760
    %320 = vmatprep.subr.mxu0 %v319
    %v321 = vand.u32 %v109, 4294901760
    %322 = vmatpush1.xpose.msra.mxu0 %v321
    %v323 = vand.u32 %v112, 4294901760
    %324 = vmatprep.subr.mxu0 %v323
    %v325 = vand.u32 %v111, 4294901760
    %326 = vmatpush1.xpose.msra.mxu0 %v325
    %v327 = vand.u32 %v44, 4294901760
    %v328 = vsub.f32 %v44, %v327
    %v329 = vand.u32 %v328, 4294901760
    %v330 = vsub.f32 %v328, %v329
    %v331 = vand.u32 %v330, 4294901760
    %332 = vmatprep.mubr.f32.mxu0 %v331
    %v333 = vand.u32 %v43, 4294901760
    %v334 = vsub.f32 %v43, %v333
    %v335 = vand.u32 %v334, 4294901760
    %v336 = vsub.f32 %v334, %v335
    %v337 = vand.u32 %v336, 4294901760
    %338 = vmatmul.mubr.f32.gmra.mrb[0].mxu0 %v337
    %v339 = vpop.f32.mrb[0].mxu0
    %v340 = vadd.f32 %v182, %v339
    %v341 = vpop.f32.mrb[0].mxu0
    %v342 = vadd.f32 %v186, %v341
    %v343 = vand.u32 %v46, 4294901760
    %v344 = vsub.f32 %v46, %v343
    %v345 = vand.u32 %v344, 4294901760
    %v346 = vsub.f32 %v344, %v345
    %v347 = vand.u32 %v346, 4294901760
    %348 = vmatprep.mubr.f32.mxu0 %v347
    %v349 = vand.u32 %v45, 4294901760
    %v350 = vsub.f32 %v45, %v349
    %v351 = vand.u32 %v350, 4294901760
    %v352 = vsub.f32 %v350, %v351
    %v353 = vand.u32 %v352, 4294901760
    %354 = vmatmul.mubr.f32.gmra.mrb[0].mxu0 %v353
    %v355 = vpop.f32.mrb[0].mxu0
    %v356 = vadd.f32 %v182, %v355
    %v357 = vpop.f32.mrb[0].mxu0
    %v358 = vadd.f32 %v186, %v357
    %v359 = vand.u32 %v48, 4294901760
    %v360 = vsub.f32 %v48, %v359
    %v361 = vand.u32 %v360, 4294901760
    %v362 = vsub.f32 %v360, %v361
    %v363 = vand.u32 %v362, 4294901760
    %364 = vmatprep.mubr.f32.mxu0 %v363
    %v365 = vand.u32 %v47, 4294901760
    %v366 = vsub.f32 %v47, %v365
    %v367 = vand.u32 %v366, 4294901760
    %v368 = vsub.f32 %v366, %v367
    %v369 = vand.u32 %v368, 4294901760
    %370 = vmatmul.mubr.f32.gmra.mrb[0].mxu0 %v369
    %v371 = vpop.f32.mrb[0].mxu0
    %v372 = vadd.f32 %v182, %v371
    %v373 = vpop.f32.mrb[0].mxu0
    %v374 = vadd.f32 %v186, %v373
    %375 = vdwg.mxu0
    %v376 = vand.u32 %v50, 4294901760
    %v377 = vsub.f32 %v50, %v376
    %v378 = vand.u32 %v377, 4294901760
    %v379 = vsub.f32 %v377, %v378
    %v380 = vand.u32 %v379, 4294901760
    %381 = vmatprep.subr.mxu0 %v380
    %v382 = vand.u32 %v49, 4294901760
    %v383 = vsub.f32 %v49, %v382
    %v384 = vand.u32 %v383, 4294901760
    %v385 = vsub.f32 %v383, %v384
    %v386 = vand.u32 %v385, 4294901760
    %387 = vmatpush1.xpose.msra.mxu0 %v386
    %v388 = vand.u32 %v52, 4294901760
    %v389 = vsub.f32 %v52, %v388
    %v390 = vand.u32 %v389, 4294901760
    %v391 = vsub.f32 %v389, %v390
    %v392 = vand.u32 %v391, 4294901760
    %393 = vmatprep.subr.mxu0 %v392
    %v394 = vand.u32 %v51, 4294901760
    %v395 = vsub.f32 %v51, %v394
    %v396 = vand.u32 %v395, 4294901760
    %v397 = vsub.f32 %v395, %v396
    %v398 = vand.u32 %v397, 4294901760
    %399 = vmatpush1.xpose.msra.mxu0 %v398
    %v400 = vand.u32 %v54, 4294901760
    %v401 = vsub.f32 %v54, %v400
    %v402 = vand.u32 %v401, 4294901760
    %v403 = vsub.f32 %v401, %v402
    %v404 = vand.u32 %v403, 4294901760
    %405 = vmatprep.subr.mxu0 %v404
    %v406 = vand.u32 %v53, 4294901760
    %v407 = vsub.f32 %v53, %v406
    %v408 = vand.u32 %v407, 4294901760
    %v409 = vsub.f32 %v407, %v408
    %v410 = vand.u32 %v409, 4294901760
    %411 = vmatpush1.xpose.msra.mxu0 %v410
    %v412 = vand.u32 %v56, 4294901760
    %v413 = vsub.f32 %v56, %v412
    %v414 = vand.u32 %v413, 4294901760
    %v415 = vsub.f32 %v413, %v414
    %v416 = vand.u32 %v415, 4294901760
    %417 = vmatprep.subr.mxu0 %v416
    %v418 = vand.u32 %v55, 4294901760
    %v419 = vsub.f32 %v55, %v418
    %v420 = vand.u32 %v419, 4294901760
    %v421 = vsub.f32 %v419, %v420
    %v422 = vand.u32 %v421, 4294901760
    %423 = vmatpush1.xpose.msra.mxu0 %v422
    %v424 = vand.u32 %v58, 4294901760
    %v425 = vsub.f32 %v58, %v424
    %v426 = vand.u32 %v425, 4294901760
    %v427 = vsub.f32 %v425, %v426
    %v428 = vand.u32 %v427, 4294901760
    %429 = vmatprep.subr.mxu0 %v428
    %v430 = vand.u32 %v57, 4294901760
    %v431 = vsub.f32 %v57, %v430
    %v432 = vand.u32 %v431, 4294901760
    %v433 = vsub.f32 %v431, %v432
    %v434 = vand.u32 %v433, 4294901760
    %435 = vmatpush1.xpose.msra.mxu0 %v434
    %v436 = vand.u32 %v60, 4294901760
    %v437 = vsub.f32 %v60, %v436
    %v438 = vand.u32 %v437, 4294901760
    %v439 = vsub.f32 %v437, %v438
    %v440 = vand.u32 %v439, 4294901760
    %441 = vmatprep.subr.mxu0 %v440
    %v442 = vand.u32 %v59, 4294901760
    %v443 = vsub.f32 %v59, %v442
    %v444 = vand.u32 %v443, 4294901760
    %v445 = vsub.f32 %v443, %v444
    %v446 = vand.u32 %v445, 4294901760
    %447 = vmatpush1.xpose.msra.mxu0 %v446
    %v448 = vand.u32 %v62, 4294901760
    %v449 = vsub.f32 %v62, %v448
    %v450 = vand.u32 %v449, 4294901760
    %v451 = vsub.f32 %v449, %v450
    %v452 = vand.u32 %v451, 4294901760
    %453 = vmatprep.subr.mxu0 %v452
    %v454 = vand.u32 %v61, 4294901760
    %v455 = vsub.f32 %v61, %v454
    %v456 = vand.u32 %v455, 4294901760
    %v457 = vsub.f32 %v455, %v456
    %v458 = vand.u32 %v457, 4294901760
    %459 = vmatpush1.xpose.msra.mxu0 %v458
    %v460 = vand.u32 %v64, 4294901760
    %v461 = vsub.f32 %v64, %v460
    %v462 = vand.u32 %v461, 4294901760
    %v463 = vsub.f32 %v461, %v462
    %v464 = vand.u32 %v463, 4294901760
    %465 = vmatprep.subr.mxu0 %v464
    %v466 = vand.u32 %v63, 4294901760
    %v467 = vsub.f32 %v63, %v466
    %v468 = vand.u32 %v467, 4294901760
    %v469 = vsub.f32 %v467, %v468
    %v470 = vand.u32 %v469, 4294901760
    %471 = vmatpush1.xpose.msra.mxu0 %v470
    %v472 = vand.u32 %v66, 4294901760
    %v473 = vsub.f32 %v66, %v472
    %v474 = vand.u32 %v473, 4294901760
    %v475 = vsub.f32 %v473, %v474
    %v476 = vand.u32 %v475, 4294901760
    %477 = vmatprep.subr.mxu0 %v476
    %v478 = vand.u32 %v65, 4294901760
    %v479 = vsub.f32 %v65, %v478
    %v480 = vand.u32 %v479, 4294901760
    %v481 = vsub.f32 %v479, %v480
    %v482 = vand.u32 %v481, 4294901760
    %483 = vmatpush1.xpose.msra.mxu0 %v482
    %v484 = vand.u32 %v68, 4294901760
    %v485 = vsub.f32 %v68, %v484
    %v486 = vand.u32 %v485, 4294901760
    %v487 = vsub.f32 %v485, %v486
    %v488 = vand.u32 %v487, 4294901760
    %489 = vmatprep.subr.mxu0 %v488
    %v490 = vand.u32 %v67, 4294901760
    %v491 = vsub.f32 %v67, %v490
    %v492 = vand.u32 %v491, 4294901760
    %v493 = vsub.f32 %v491, %v492
    %v494 = vand.u32 %v493, 4294901760
    %495 = vmatpush1.xpose.msra.mxu0 %v494
    %v496 = vand.u32 %v70, 4294901760
    %v497 = vsub.f32 %v70, %v496
    %v498 = vand.u32 %v497, 4294901760
    %v499 = vsub.f32 %v497, %v498
    %v500 = vand.u32 %v499, 4294901760
    %501 = vmatprep.subr.mxu0 %v500
    %v502 = vand.u32 %v69, 4294901760
    %v503 = vsub.f32 %v69, %v502
    %v504 = vand.u32 %v503, 4294901760
    %v505 = vsub.f32 %v503, %v504
    %v506 = vand.u32 %v505, 4294901760
    %507 = vmatpush1.xpose.msra.mxu0 %v506
    %v508 = vand.u32 %v72, 4294901760
    %v509 = vsub.f32 %v72, %v508
    %v510 = vand.u32 %v509, 4294901760
    %v511 = vsub.f32 %v509, %v510
    %v512 = vand.u32 %v511, 4294901760
    %513 = vmatprep.subr.mxu0 %v512
    %v514 = vand.u32 %v71, 4294901760
    %v515 = vsub.f32 %v71, %v514
    %v516 = vand.u32 %v515, 4294901760
    %v517 = vsub.f32 %v515, %v516
    %v518 = vand.u32 %v517, 4294901760
    %519 = vmatpush1.xpose.msra.mxu0 %v518
    %v520 = vand.u32 %v74, 4294901760
    %v521 = vsub.f32 %v74, %v520
    %v522 = vand.u32 %v521, 4294901760
    %v523 = vsub.f32 %v521, %v522
    %v524 = vand.u32 %v523, 4294901760
    %525 = vmatprep.subr.mxu0 %v524
    %v526 = vand.u32 %v73, 4294901760
    %v527 = vsub.f32 %v73, %v526
    %v528 = vand.u32 %v527, 4294901760
    %v529 = vsub.f32 %v527, %v528
    %v530 = vand.u32 %v529, 4294901760
    %531 = vmatpush1.xpose.msra.mxu0 %v530
    %v532 = vand.u32 %v76, 4294901760
    %v533 = vsub.f32 %v76, %v532
    %v534 = vand.u32 %v533, 4294901760
    %v535 = vsub.f32 %v533, %v534
    %v536 = vand.u32 %v535, 4294901760
    %537 = vmatprep.subr.mxu0 %v536
    %v538 = vand.u32 %v75, 4294901760
    %v539 = vsub.f32 %v75, %v538
    %v540 = vand.u32 %v539, 4294901760
    %v541 = vsub.f32 %v539, %v540
    %v542 = vand.u32 %v541, 4294901760
    %543 = vmatpush1.xpose.msra.mxu0 %v542
    %v544 = vand.u32 %v78, 4294901760
    %v545 = vsub.f32 %v78, %v544
    %v546 = vand.u32 %v545, 4294901760
    %v547 = vsub.f32 %v545, %v546
    %v548 = vand.u32 %v547, 4294901760
    %549 = vmatprep.subr.mxu0 %v548
    %v550 = vand.u32 %v77, 4294901760
    %v551 = vsub.f32 %v77, %v550
    %v552 = vand.u32 %v551, 4294901760
    %v553 = vsub.f32 %v551, %v552
    %v554 = vand.u32 %v553, 4294901760
    %555 = vmatpush1.xpose.msra.mxu0 %v554
    %v556 = vand.u32 %v80, 4294901760
    %v557 = vsub.f32 %v80, %v556
    %v558 = vand.u32 %v557, 4294901760
    %v559 = vsub.f32 %v557, %v558
    %v560 = vand.u32 %v559, 4294901760
    %561 = vmatprep.subr.mxu0 %v560
    %v562 = vand.u32 %v79, 4294901760
    %v563 = vsub.f32 %v79, %v562
    %v564 = vand.u32 %v563, 4294901760
    %v565 = vsub.f32 %v563, %v564
    %v566 = vand.u32 %v565, 4294901760
    %567 = vmatpush1.xpose.msra.mxu0 %v566
    %v568 = vand.u32 %v82, 4294901760
    %v569 = vsub.f32 %v82, %v568
    %v570 = vand.u32 %v569, 4294901760
    %v571 = vsub.f32 %v569, %v570
    %v572 = vand.u32 %v571, 4294901760
    %573 = vmatprep.subr.mxu0 %v572
    %v574 = vand.u32 %v81, 4294901760
    %v575 = vsub.f32 %v81, %v574
    %v576 = vand.u32 %v575, 4294901760
    %v577 = vsub.f32 %v575, %v576
    %v578 = vand.u32 %v577, 4294901760
    %579 = vmatpush1.xpose.msra.mxu0 %v578
    %v580 = vand.u32 %v84, 4294901760
    %v581 = vsub.f32 %v84, %v580
    %v582 = vand.u32 %v581, 4294901760
    %v583 = vsub.f32 %v581, %v582
    %v584 = vand.u32 %v583, 4294901760
    %585 = vmatprep.subr.mxu0 %v584
    %v586 = vand.u32 %v83, 4294901760
    %v587 = vsub.f32 %v83, %v586
    %v588 = vand.u32 %v587, 4294901760
    %v589 = vsub.f32 %v587, %v588
    %v590 = vand.u32 %v589, 4294901760
    %591 = vmatpush1.xpose.msra.mxu0 %v590
    %v592 = vand.u32 %v86, 4294901760
    %v593 = vsub.f32 %v86, %v592
    %v594 = vand.u32 %v593, 4294901760
    %v595 = vsub.f32 %v593, %v594
    %v596 = vand.u32 %v595, 4294901760
    %597 = vmatprep.subr.mxu0 %v596
    %v598 = vand.u32 %v85, 4294901760
    %v599 = vsub.f32 %v85, %v598
    %v600 = vand.u32 %v599, 4294901760
    %v601 = vsub.f32 %v599, %v600
    %v602 = vand.u32 %v601, 4294901760
    %603 = vmatpush1.xpose.msra.mxu0 %v602
    %v604 = vand.u32 %v88, 4294901760
    %v605 = vsub.f32 %v88, %v604
    %v606 = vand.u32 %v605, 4294901760
    %v607 = vsub.f32 %v605, %v606
    %v608 = vand.u32 %v607, 4294901760
    %609 = vmatprep.subr.mxu0 %v608
    %v610 = vand.u32 %v87, 4294901760
    %v611 = vsub.f32 %v87, %v610
    %v612 = vand.u32 %v611, 4294901760
    %v613 = vsub.f32 %v611, %v612
    %v614 = vand.u32 %v613, 4294901760
    %615 = vmatpush1.xpose.msra.mxu0 %v614
    %v616 = vand.u32 %v90, 4294901760
    %v617 = vsub.f32 %v90, %v616
    %v618 = vand.u32 %v617, 4294901760
    %v619 = vsub.f32 %v617, %v618
    %v620 = vand.u32 %v619, 4294901760
    %621 = vmatprep.subr.mxu0 %v620
    %v622 = vand.u32 %v89, 4294901760
    %v623 = vsub.f32 %v89, %v622
    %v624 = vand.u32 %v623, 4294901760
    %v625 = vsub.f32 %v623, %v624
    %v626 = vand.u32 %v625, 4294901760
    %627 = vmatpush1.xpose.msra.mxu0 %v626
    %v628 = vand.u32 %v92, 4294901760
    %v629 = vsub.f32 %v92, %v628
    %v630 = vand.u32 %v629, 4294901760
    %v631 = vsub.f32 %v629, %v630
    %v632 = vand.u32 %v631, 4294901760
    %633 = vmatprep.subr.mxu0 %v632
    %v634 = vand.u32 %v91, 4294901760
    %v635 = vsub.f32 %v91, %v634
    %v636 = vand.u32 %v635, 4294901760
    %v637 = vsub.f32 %v635, %v636
    %v638 = vand.u32 %v637, 4294901760
    %639 = vmatpush1.xpose.msra.mxu0 %v638
    %v640 = vand.u32 %v94, 4294901760
    %v641 = vsub.f32 %v94, %v640
    %v642 = vand.u32 %v641, 4294901760
    %v643 = vsub.f32 %v641, %v642
    %v644 = vand.u32 %v643, 4294901760
    %645 = vmatprep.subr.mxu0 %v644
    %v646 = vand.u32 %v93, 4294901760
    %v647 = vsub.f32 %v93, %v646
    %v648 = vand.u32 %v647, 4294901760
    %v649 = vsub.f32 %v647, %v648
    %v650 = vand.u32 %v649, 4294901760
    %651 = vmatpush1.xpose.msra.mxu0 %v650
    %v652 = vand.u32 %v96, 4294901760
    %v653 = vsub.f32 %v96, %v652
    %v654 = vand.u32 %v653, 4294901760
    %v655 = vsub.f32 %v653, %v654
    %v656 = vand.u32 %v655, 4294901760
    %657 = vmatprep.subr.mxu0 %v656
    %v658 = vand.u32 %v95, 4294901760
    %v659 = vsub.f32 %v95, %v658
    %v660 = vand.u32 %v659, 4294901760
    %v661 = vsub.f32 %v659, %v660
    %v662 = vand.u32 %v661, 4294901760
    %663 = vmatpush1.xpose.msra.mxu0 %v662
    %v664 = vand.u32 %v98, 4294901760
    %v665 = vsub.f32 %v98, %v664
    %v666 = vand.u32 %v665, 4294901760
    %v667 = vsub.f32 %v665, %v666
    %v668 = vand.u32 %v667, 4294901760
    %669 = vmatprep.subr.mxu0 %v668
    %v670 = vand.u32 %v97, 4294901760
    %v671 = vsub.f32 %v97, %v670
    %v672 = vand.u32 %v671, 4294901760
    %v673 = vsub.f32 %v671, %v672
    %v674 = vand.u32 %v673, 4294901760
    %675 = vmatpush1.xpose.msra.mxu0 %v674
    %v676 = vand.u32 %v100, 4294901760
    %v677 = vsub.f32 %v100, %v676
    %v678 = vand.u32 %v677, 4294901760
    %v679 = vsub.f32 %v677, %v678
    %v680 = vand.u32 %v679, 4294901760
    %681 = vmatprep.subr.mxu0 %v680
    %v682 = vand.u32 %v99, 4294901760
    %v683 = vsub.f32 %v99, %v682
    %v684 = vand.u32 %v683, 4294901760
    %v685 = vsub.f32 %v683, %v684
    %v686 = vand.u32 %v685, 4294901760
    %687 = vmatpush1.xpose.msra.mxu0 %v686
    %v688 = vand.u32 %v102, 4294901760
    %v689 = vsub.f32 %v102, %v688
    %v690 = vand.u32 %v689, 4294901760
    %v691 = vsub.f32 %v689, %v690
    %v692 = vand.u32 %v691, 4294901760
    %693 = vmatprep.subr.mxu0 %v692
    %v694 = vand.u32 %v101, 4294901760
    %v695 = vsub.f32 %v101, %v694
    %v696 = vand.u32 %v695, 4294901760
    %v697 = vsub.f32 %v695, %v696
    %v698 = vand.u32 %v697, 4294901760
    %699 = vmatpush1.xpose.msra.mxu0 %v698
    %v700 = vand.u32 %v104, 4294901760
    %v701 = vsub.f32 %v104, %v700
    %v702 = vand.u32 %v701, 4294901760
    %v703 = vsub.f32 %v701, %v702
    %v704 = vand.u32 %v703, 4294901760
    %705 = vmatprep.subr.mxu0 %v704
    %v706 = vand.u32 %v103, 4294901760
    %v707 = vsub.f32 %v103, %v706
    %v708 = vand.u32 %v707, 4294901760
    %v709 = vsub.f32 %v707, %v708
    %v710 = vand.u32 %v709, 4294901760
    %711 = vmatpush1.xpose.msra.mxu0 %v710
    %v712 = vand.u32 %v106, 4294901760
    %v713 = vsub.f32 %v106, %v712
    %v714 = vand.u32 %v713, 4294901760
    %v715 = vsub.f32 %v713, %v714
    %v716 = vand.u32 %v715, 4294901760
    %717 = vmatprep.subr.mxu0 %v716
    %v718 = vand.u32 %v105, 4294901760
    %v719 = vsub.f32 %v105, %v718
    %v720 = vand.u32 %v719, 4294901760
    %v721 = vsub.f32 %v719, %v720
    %v722 = vand.u32 %v721, 4294901760
    %723 = vmatpush1.xpose.msra.mxu0 %v722
    %v724 = vand.u32 %v108, 4294901760
    %v725 = vsub.f32 %v108, %v724
    %v726 = vand.u32 %v725, 4294901760
    %v727 = vsub.f32 %v725, %v726
    %v728 = vand.u32 %v727, 4294901760
    %729 = vmatprep.subr.mxu0 %v728
    %v730 = vand.u32 %v107, 4294901760
    %v731 = vsub.f32 %v107, %v730
    %v732 = vand.u32 %v731, 4294901760
    %v733 = vsub.f32 %v731, %v732
    %v734 = vand.u32 %v733, 4294901760
    %735 = vmatpush1.xpose.msra.mxu0 %v734
    %v736 = vand.u32 %v110, 4294901760
    %v737 = vsub.f32 %v110, %v736
    %v738 = vand.u32 %v737, 4294901760
    %v739 = vsub.f32 %v737, %v738
    %v740 = vand.u32 %v739, 4294901760
    %741 = vmatprep.subr.mxu0 %v740
    %v742 = vand.u32 %v109, 4294901760
    %v743 = vsub.f32 %v109, %v742
    %v744 = vand.u32 %v743, 4294901760
    %v745 = vsub.f32 %v743, %v744
    %v746 = vand.u32 %v745, 4294901760
    %747 = vmatpush1.xpose.msra.mxu0 %v746
    %v748 = vand.u32 %v112, 4294901760
    %v749 = vsub.f32 %v112, %v748
    %v750 = vand.u32 %v749, 4294901760
    %v751 = vsub.f32 %v749, %v750
    %v752 = vand.u32 %v751, 4294901760
    %753 = vmatprep.subr.mxu0 %v752
    %v754 = vand.u32 %v111, 4294901760
    %v755 = vsub.f32 %v111, %v754
    %v756 = vand.u32 %v755, 4294901760
    %v757 = vsub.f32 %v755, %v756
    %v758 = vand.u32 %v757, 4294901760
    %759 = vmatpush1.xpose.msra.mxu0 %v758
    %v760 = vand.u32 %v44, 4294901760
    %761 = vmatprep.mubr.f32.mxu0 %v760
    %v762 = vand.u32 %v43, 4294901760
    %763 = vmatmul.mubr.f32.gmra.mrb[0].mxu0 %v762
    %v764 = vpop.f32.mrb[0].mxu0
    %v765 = vadd.f32 %v340, %v764
    %v766 = vpop.f32.mrb[0].mxu0
    %v767 = vadd.f32 %v342, %v766
    %v768 = vand.u32 %v46, 4294901760
    %769 = vmatprep.mubr.f32.mxu0 %v768
    %v770 = vand.u32 %v45, 4294901760
    %771 = vmatmul.mubr.f32.gmra.mrb[0].mxu0 %v770
    %v772 = vpop.f32.mrb[0].mxu0
    %v773 = vadd.f32 %v356, %v772
    %v774 = vpop.f32.mrb[0].mxu0
    %v775 = vadd.f32 %v358, %v774
    %v776 = vand.u32 %v48, 4294901760
    %777 = vmatprep.mubr.f32.mxu0 %v776
    %v778 = vand.u32 %v47, 4294901760
    %779 = vmatmul.mubr.f32.gmra.mrb[0].mxu0 %v778
    %v780 = vpop.f32.mrb[0].mxu0
    %v781 = vadd.f32 %v372, %v780
    %v782 = vpop.f32.mrb[0].mxu0
    %v783 = vadd.f32 %v374, %v782
    %784 = vdwg.mxu0
    %v785 = vand.u32 %v50, 4294901760
    %v786 = vsub.f32 %v50, %v785
    %787 = vmatprep.subr.mxu0 %v786
    %v788 = vand.u32 %v49, 4294901760
    %v789 = vsub.f32 %v49, %v788
    %790 = vmatpush1.xpose.msra.mxu0 %v789
    %v791 = vand.u32 %v52, 4294901760
    %v792 = vsub.f32 %v52, %v791
    %793 = vmatprep.subr.mxu0 %v792
    %v794 = vand.u32 %v51, 4294901760
    %v795 = vsub.f32 %v51, %v794
    %796 = vmatpush1.xpose.msra.mxu0 %v795
    %v797 = vand.u32 %v54, 4294901760
    %v798 = vsub.f32 %v54, %v797
    %799 = vmatprep.subr.mxu0 %v798
    %v800 = vand.u32 %v53, 4294901760
    %v801 = vsub.f32 %v53, %v800
    %802 = vmatpush1.xpose.msra.mxu0 %v801
    %v803 = vand.u32 %v56, 4294901760
    %v804 = vsub.f32 %v56, %v803
    %805 = vmatprep.subr.mxu0 %v804
    %v806 = vand.u32 %v55, 4294901760
    %v807 = vsub.f32 %v55, %v806
    %808 = vmatpush1.xpose.msra.mxu0 %v807
    %v809 = vand.u32 %v58, 4294901760
    %v810 = vsub.f32 %v58, %v809
    %811 = vmatprep.subr.mxu0 %v810
    %v812 = vand.u32 %v57, 4294901760
    %v813 = vsub.f32 %v57, %v812
    %814 = vmatpush1.xpose.msra.mxu0 %v813
    %v815 = vand.u32 %v60, 4294901760
    %v816 = vsub.f32 %v60, %v815
    %817 = vmatprep.subr.mxu0 %v816
    %v818 = vand.u32 %v59, 4294901760
    %v819 = vsub.f32 %v59, %v818
    %820 = vmatpush1.xpose.msra.mxu0 %v819
    %v821 = vand.u32 %v62, 4294901760
    %v822 = vsub.f32 %v62, %v821
    %823 = vmatprep.subr.mxu0 %v822
    %v824 = vand.u32 %v61, 4294901760
    %v825 = vsub.f32 %v61, %v824
    %826 = vmatpush1.xpose.msra.mxu0 %v825
    %v827 = vand.u32 %v64, 4294901760
    %v828 = vsub.f32 %v64, %v827
    %829 = vmatprep.subr.mxu0 %v828
    %v830 = vand.u32 %v63, 4294901760
    %v831 = vsub.f32 %v63, %v830
    %832 = vmatpush1.xpose.msra.mxu0 %v831
    %v833 = vand.u32 %v66, 4294901760
    %v834 = vsub.f32 %v66, %v833
    %835 = vmatprep.subr.mxu0 %v834
    %v836 = vand.u32 %v65, 4294901760
    %v837 = vsub.f32 %v65, %v836
    %838 = vmatpush1.xpose.msra.mxu0 %v837
    %v839 = vand.u32 %v68, 4294901760
    %v840 = vsub.f32 %v68, %v839
    %841 = vmatprep.subr.mxu0 %v840
    %v842 = vand.u32 %v67, 4294901760
    %v843 = vsub.f32 %v67, %v842
    %844 = vmatpush1.xpose.msra.mxu0 %v843
    %v845 = vand.u32 %v70, 4294901760
    %v846 = vsub.f32 %v70, %v845
    %847 = vmatprep.subr.mxu0 %v846
    %v848 = vand.u32 %v69, 4294901760
    %v849 = vsub.f32 %v69, %v848
    %850 = vmatpush1.xpose.msra.mxu0 %v849
    %v851 = vand.u32 %v72, 4294901760
    %v852 = vsub.f32 %v72, %v851
    %853 = vmatprep.subr.mxu0 %v852
    %v854 = vand.u32 %v71, 4294901760
    %v855 = vsub.f32 %v71, %v854
    %856 = vmatpush1.xpose.msra.mxu0 %v855
    %v857 = vand.u32 %v74, 4294901760
    %v858 = vsub.f32 %v74, %v857
    %859 = vmatprep.subr.mxu0 %v858
    %v860 = vand.u32 %v73, 4294901760
    %v861 = vsub.f32 %v73, %v860
    %862 = vmatpush1.xpose.msra.mxu0 %v861
    %v863 = vand.u32 %v76, 4294901760
    %v864 = vsub.f32 %v76, %v863
    %865 = vmatprep.subr.mxu0 %v864
    %v866 = vand.u32 %v75, 4294901760
    %v867 = vsub.f32 %v75, %v866
    %868 = vmatpush1.xpose.msra.mxu0 %v867
    %v869 = vand.u32 %v78, 4294901760
    %v870 = vsub.f32 %v78, %v869
    %871 = vmatprep.subr.mxu0 %v870
    %v872 = vand.u32 %v77, 4294901760
    %v873 = vsub.f32 %v77, %v872
    %874 = vmatpush1.xpose.msra.mxu0 %v873
    %v875 = vand.u32 %v80, 4294901760
    %v876 = vsub.f32 %v80, %v875
    %877 = vmatprep.subr.mxu0 %v876
    %v878 = vand.u32 %v79, 4294901760
    %v879 = vsub.f32 %v79, %v878
    %880 = vmatpush1.xpose.msra.mxu0 %v879
    %v881 = vand.u32 %v82, 4294901760
    %v882 = vsub.f32 %v82, %v881
    %883 = vmatprep.subr.mxu0 %v882
    %v884 = vand.u32 %v81, 4294901760
    %v885 = vsub.f32 %v81, %v884
    %886 = vmatpush1.xpose.msra.mxu0 %v885
    %v887 = vand.u32 %v84, 4294901760
    %v888 = vsub.f32 %v84, %v887
    %889 = vmatprep.subr.mxu0 %v888
    %v890 = vand.u32 %v83, 4294901760
    %v891 = vsub.f32 %v83, %v890
    %892 = vmatpush1.xpose.msra.mxu0 %v891
    %v893 = vand.u32 %v86, 4294901760
    %v894 = vsub.f32 %v86, %v893
    %895 = vmatprep.subr.mxu0 %v894
    %v896 = vand.u32 %v85, 4294901760
    %v897 = vsub.f32 %v85, %v896
    %898 = vmatpush1.xpose.msra.mxu0 %v897
    %v899 = vand.u32 %v88, 4294901760
    %v900 = vsub.f32 %v88, %v899
    %901 = vmatprep.subr.mxu0 %v900
    %v902 = vand.u32 %v87, 4294901760
    %v903 = vsub.f32 %v87, %v902
    %904 = vmatpush1.xpose.msra.mxu0 %v903
    %v905 = vand.u32 %v90, 4294901760
    %v906 = vsub.f32 %v90, %v905
    %907 = vmatprep.subr.mxu0 %v906
    %v908 = vand.u32 %v89, 4294901760
    %v909 = vsub.f32 %v89, %v908
    %910 = vmatpush1.xpose.msra.mxu0 %v909
    %v911 = vand.u32 %v92, 4294901760
    %v912 = vsub.f32 %v92, %v911
    %913 = vmatprep.subr.mxu0 %v912
    %v914 = vand.u32 %v91, 4294901760
    %v915 = vsub.f32 %v91, %v914
    %916 = vmatpush1.xpose.msra.mxu0 %v915
    %v917 = vand.u32 %v94, 4294901760
    %v918 = vsub.f32 %v94, %v917
    %919 = vmatprep.subr.mxu0 %v918
    %v920 = vand.u32 %v93, 4294901760
    %v921 = vsub.f32 %v93, %v920
    %922 = vmatpush1.xpose.msra.mxu0 %v921
    %v923 = vand.u32 %v96, 4294901760
    %v924 = vsub.f32 %v96, %v923
    %925 = vmatprep.subr.mxu0 %v924
    %v926 = vand.u32 %v95, 4294901760
    %v927 = vsub.f32 %v95, %v926
    %928 = vmatpush1.xpose.msra.mxu0 %v927
    %v929 = vand.u32 %v98, 4294901760
    %v930 = vsub.f32 %v98, %v929
    %931 = vmatprep.subr.mxu0 %v930
    %v932 = vand.u32 %v97, 4294901760
    %v933 = vsub.f32 %v97, %v932
    %934 = vmatpush1.xpose.msra.mxu0 %v933
    %v935 = vand.u32 %v100, 4294901760
    %v936 = vsub.f32 %v100, %v935
    %937 = vmatprep.subr.mxu0 %v936
    %v938 = vand.u32 %v99, 4294901760
    %v939 = vsub.f32 %v99, %v938
    %940 = vmatpush1.xpose.msra.mxu0 %v939
    %v941 = vand.u32 %v102, 4294901760
    %v942 = vsub.f32 %v102, %v941
    %943 = vmatprep.subr.mxu0 %v942
    %v944 = vand.u32 %v101, 4294901760
    %v945 = vsub.f32 %v101, %v944
    %946 = vmatpush1.xpose.msra.mxu0 %v945
    %v947 = vand.u32 %v104, 4294901760
    %v948 = vsub.f32 %v104, %v947
    %949 = vmatprep.subr.mxu0 %v948
    %v950 = vand.u32 %v103, 4294901760
    %v951 = vsub.f32 %v103, %v950
    %952 = vmatpush1.xpose.msra.mxu0 %v951
    %v953 = vand.u32 %v106, 4294901760
    %v954 = vsub.f32 %v106, %v953
    %955 = vmatprep.subr.mxu0 %v954
    %v956 = vand.u32 %v105, 4294901760
    %v957 = vsub.f32 %v105, %v956
    %958 = vmatpush1.xpose.msra.mxu0 %v957
    %v959 = vand.u32 %v108, 4294901760
    %v960 = vsub.f32 %v108, %v959
    %961 = vmatprep.subr.mxu0 %v960
    %v962 = vand.u32 %v107, 4294901760
    %v963 = vsub.f32 %v107, %v962
    %964 = vmatpush1.xpose.msra.mxu0 %v963
    %v965 = vand.u32 %v110, 4294901760
    %v966 = vsub.f32 %v110, %v965
    %967 = vmatprep.subr.mxu0 %v966
    %v968 = vand.u32 %v109, 4294901760
    %v969 = vsub.f32 %v109, %v968
    %970 = vmatpush1.xpose.msra.mxu0 %v969
    %v971 = vand.u32 %v112, 4294901760
    %v972 = vsub.f32 %v112, %v971
    %973 = vmatprep.subr.mxu0 %v972
    %v974 = vand.u32 %v111, 4294901760
    %v975 = vsub.f32 %v111, %v974
    %976 = vmatpush1.xpose.msra.mxu0 %v975
    %v977 = vand.u32 %v44, 4294901760
    %v978 = vsub.f32 %v44, %v977
    %979 = vmatprep.mubr.f32.mxu0 %v978
    %v980 = vand.u32 %v43, 4294901760
    %v981 = vsub.f32 %v43, %v980
    %982 = vmatmul.mubr.f32.gmra.mrb[0].mxu0 %v981
    %v983 = vpop.f32.mrb[0].mxu0
    %v984 = vadd.f32 %v765, %v983
    %v985 = vpop.f32.mrb[0].mxu0
    %v986 = vadd.f32 %v767, %v985
    %v987 = vand.u32 %v46, 4294901760
    %v988 = vsub.f32 %v46, %v987
    %989 = vmatprep.mubr.f32.mxu0 %v988
    %v990 = vand.u32 %v45, 4294901760
    %v991 = vsub.f32 %v45, %v990
    %992 = vmatmul.mubr.f32.gmra.mrb[0].mxu0 %v991
    %v993 = vpop.f32.mrb[0].mxu0
    %v994 = vadd.f32 %v773, %v993
    %v995 = vpop.f32.mrb[0].mxu0
    %v996 = vadd.f32 %v775, %v995
    %v997 = vand.u32 %v48, 4294901760
    %v998 = vsub.f32 %v48, %v997
    %999 = vmatprep.mubr.f32.mxu0 %v998
    %v1000 = vand.u32 %v47, 4294901760
    %v1001 = vsub.f32 %v47, %v1000
    %1002 = vmatmul.mubr.f32.gmra.mrb[0].mxu0 %v1001
    %v1003 = vpop.f32.mrb[0].mxu0
    %v1004 = vadd.f32 %v781, %v1003
    %v1005 = vpop.f32.mrb[0].mxu0
    %v1006 = vadd.f32 %v783, %v1005
    %1007 = vdwg.mxu0
    %v1008 = vand.u32 %v50, 4294901760
    %1009 = vmatprep.subr.mxu0 %v1008
    %v1010 = vand.u32 %v49, 4294901760
    %1011 = vmatpush1.xpose.msra.mxu0 %v1010
    %v1012 = vand.u32 %v52, 4294901760
    %1013 = vmatprep.subr.mxu0 %v1012
    %v1014 = vand.u32 %v51, 4294901760
    %1015 = vmatpush1.xpose.msra.mxu0 %v1014
    %v1016 = vand.u32 %v54, 4294901760
    %1017 = vmatprep.subr.mxu0 %v1016
    %v1018 = vand.u32 %v53, 4294901760
    %1019 = vmatpush1.xpose.msra.mxu0 %v1018
    %v1020 = vand.u32 %v56, 4294901760
    %1021 = vmatprep.subr.mxu0 %v1020
    %v1022 = vand.u32 %v55, 4294901760
    %1023 = vmatpush1.xpose.msra.mxu0 %v1022
    %v1024 = vand.u32 %v58, 4294901760
    %1025 = vmatprep.subr.mxu0 %v1024
    %v1026 = vand.u32 %v57, 4294901760
    %1027 = vmatpush1.xpose.msra.mxu0 %v1026
    %v1028 = vand.u32 %v60, 4294901760
    %1029 = vmatprep.subr.mxu0 %v1028
    %v1030 = vand.u32 %v59, 4294901760
    %1031 = vmatpush1.xpose.msra.mxu0 %v1030
    %v1032 = vand.u32 %v62, 4294901760
    %1033 = vmatprep.subr.mxu0 %v1032
    %v1034 = vand.u32 %v61, 4294901760
    %1035 = vmatpush1.xpose.msra.mxu0 %v1034
    %v1036 = vand.u32 %v64, 4294901760
    %1037 = vmatprep.subr.mxu0 %v1036
    %v1038 = vand.u32 %v63, 4294901760
    %1039 = vmatpush1.xpose.msra.mxu0 %v1038
    %v1040 = vand.u32 %v66, 4294901760
    %1041 = vmatprep.subr.mxu0 %v1040
    %v1042 = vand.u32 %v65, 4294901760
    %1043 = vmatpush1.xpose.msra.mxu0 %v1042
    %v1044 = vand.u32 %v68, 4294901760
    %1045 = vmatprep.subr.mxu0 %v1044
    %v1046 = vand.u32 %v67, 4294901760
    %1047 = vmatpush1.xpose.msra.mxu0 %v1046
    %v1048 = vand.u32 %v70, 4294901760
    %1049 = vmatprep.subr.mxu0 %v1048
    %v1050 = vand.u32 %v69, 4294901760
    %1051 = vmatpush1.xpose.msra.mxu0 %v1050
    %v1052 = vand.u32 %v72, 4294901760
    %1053 = vmatprep.subr.mxu0 %v1052
    %v1054 = vand.u32 %v71, 4294901760
    %1055 = vmatpush1.xpose.msra.mxu0 %v1054
    %v1056 = vand.u32 %v74, 4294901760
    %1057 = vmatprep.subr.mxu0 %v1056
    %v1058 = vand.u32 %v73, 4294901760
    %1059 = vmatpush1.xpose.msra.mxu0 %v1058
    %v1060 = vand.u32 %v76, 4294901760
    %1061 = vmatprep.subr.mxu0 %v1060
    %v1062 = vand.u32 %v75, 4294901760
    %1063 = vmatpush1.xpose.msra.mxu0 %v1062
    %v1064 = vand.u32 %v78, 4294901760
    %1065 = vmatprep.subr.mxu0 %v1064
    %v1066 = vand.u32 %v77, 4294901760
    %1067 = vmatpush1.xpose.msra.mxu0 %v1066
    %v1068 = vand.u32 %v80, 4294901760
    %1069 = vmatprep.subr.mxu0 %v1068
    %v1070 = vand.u32 %v79, 4294901760
    %1071 = vmatpush1.xpose.msra.mxu0 %v1070
    %v1072 = vand.u32 %v82, 4294901760
    %1073 = vmatprep.subr.mxu0 %v1072
    %v1074 = vand.u32 %v81, 4294901760
    %1075 = vmatpush1.xpose.msra.mxu0 %v1074
    %v1076 = vand.u32 %v84, 4294901760
    %1077 = vmatprep.subr.mxu0 %v1076
    %v1078 = vand.u32 %v83, 4294901760
    %1079 = vmatpush1.xpose.msra.mxu0 %v1078
    %v1080 = vand.u32 %v86, 4294901760
    %1081 = vmatprep.subr.mxu0 %v1080
    %v1082 = vand.u32 %v85, 4294901760
    %1083 = vmatpush1.xpose.msra.mxu0 %v1082
    %v1084 = vand.u32 %v88, 4294901760
    %1085 = vmatprep.subr.mxu0 %v1084
    %v1086 = vand.u32 %v87, 4294901760
    %1087 = vmatpush1.xpose.msra.mxu0 %v1086
    %v1088 = vand.u32 %v90, 4294901760
    %1089 = vmatprep.subr.mxu0 %v1088
    %v1090 = vand.u32 %v89, 4294901760
    %1091 = vmatpush1.xpose.msra.mxu0 %v1090
    %v1092 = vand.u32 %v92, 4294901760
    %1093 = vmatprep.subr.mxu0 %v1092
    %v1094 = vand.u32 %v91, 4294901760
    %1095 = vmatpush1.xpose.msra.mxu0 %v1094
    %v1096 = vand.u32 %v94, 4294901760
    %1097 = vmatprep.subr.mxu0 %v1096
    %v1098 = vand.u32 %v93, 4294901760
    %1099 = vmatpush1.xpose.msra.mxu0 %v1098
    %v1100 = vand.u32 %v96, 4294901760
    %1101 = vmatprep.subr.mxu0 %v1100
    %v1102 = vand.u32 %v95, 4294901760
    %1103 = vmatpush1.xpose.msra.mxu0 %v1102
    %v1104 = vand.u32 %v98, 4294901760
    %1105 = vmatprep.subr.mxu0 %v1104
    %v1106 = vand.u32 %v97, 4294901760
    %1107 = vmatpush1.xpose.msra.mxu0 %v1106
    %v1108 = vand.u32 %v100, 4294901760
    %1109 = vmatprep.subr.mxu0 %v1108
    %v1110 = vand.u32 %v99, 4294901760
    %1111 = vmatpush1.xpose.msra.mxu0 %v1110
    %v1112 = vand.u32 %v102, 4294901760
    %1113 = vmatprep.subr.mxu0 %v1112
    %v1114 = vand.u32 %v101, 4294901760
    %1115 = vmatpush1.xpose.msra.mxu0 %v1114
    %v1116 = vand.u32 %v104, 4294901760
    %1117 = vmatprep.subr.mxu0 %v1116
    %v1118 = vand.u32 %v103, 4294901760
    %1119 = vmatpush1.xpose.msra.mxu0 %v1118
    %v1120 = vand.u32 %v106, 4294901760
    %1121 = vmatprep.subr.mxu0 %v1120
    %v1122 = vand.u32 %v105, 4294901760
    %1123 = vmatpush1.xpose.msra.mxu0 %v1122
    %v1124 = vand.u32 %v108, 4294901760
    %1125 = vmatprep.subr.mxu0 %v1124
    %v1126 = vand.u32 %v107, 4294901760
    %1127 = vmatpush1.xpose.msra.mxu0 %v1126
    %v1128 = vand.u32 %v110, 4294901760
    %1129 = vmatprep.subr.mxu0 %v1128
    %v1130 = vand.u32 %v109, 4294901760
    %1131 = vmatpush1.xpose.msra.mxu0 %v1130
    %v1132 = vand.u32 %v112, 4294901760
    %1133 = vmatprep.subr.mxu0 %v1132
    %v1134 = vand.u32 %v111, 4294901760
    %1135 = vmatpush1.xpose.msra.mxu0 %v1134
    %v1136 = vand.u32 %v44, 4294901760
    %v1137 = vsub.f32 %v44, %v1136
    %v1138 = vand.u32 %v1137, 4294901760
    %1139 = vmatprep.mubr.f32.mxu0 %v1138
    %v1140 = vand.u32 %v43, 4294901760
    %v1141 = vsub.f32 %v43, %v1140
    %v1142 = vand.u32 %v1141, 4294901760
    %1143 = vmatmul.mubr.f32.gmra.mrb[0].mxu0 %v1142
    %v1144 = vpop.f32.mrb[0].mxu0
    %v1145 = vadd.f32 %v984, %v1144
    %v1146 = vpop.f32.mrb[0].mxu0
    %v1147 = vadd.f32 %v986, %v1146
    %v1148 = vand.u32 %v46, 4294901760
    %v1149 = vsub.f32 %v46, %v1148
    %v1150 = vand.u32 %v1149, 4294901760
    %1151 = vmatprep.mubr.f32.mxu0 %v1150
    %v1152 = vand.u32 %v45, 4294901760
    %v1153 = vsub.f32 %v45, %v1152
    %v1154 = vand.u32 %v1153, 4294901760
    %1155 = vmatmul.mubr.f32.gmra.mrb[0].mxu0 %v1154
    %v1156 = vpop.f32.mrb[0].mxu0
    %v1157 = vadd.f32 %v994, %v1156
    %v1158 = vpop.f32.mrb[0].mxu0
    %v1159 = vadd.f32 %v996, %v1158
    %v1160 = vand.u32 %v48, 4294901760
    %v1161 = vsub.f32 %v48, %v1160
    %v1162 = vand.u32 %v1161, 4294901760
    %1163 = vmatprep.mubr.f32.mxu0 %v1162
    %v1164 = vand.u32 %v47, 4294901760
    %v1165 = vsub.f32 %v47, %v1164
    %v1166 = vand.u32 %v1165, 4294901760
    %1167 = vmatmul.mubr.f32.gmra.mrb[0].mxu0 %v1166
    %v1168 = vpop.f32.mrb[0].mxu0
    %v1169 = vadd.f32 %v1004, %v1168
    %v1170 = vpop.f32.mrb[0].mxu0
    %v1171 = vadd.f32 %v1006, %v1170
    %1172 = vdwg.mxu0
    %v1173 = vand.u32 %v50, 4294901760
    %v1174 = vsub.f32 %v50, %v1173
    %v1175 = vand.u32 %v1174, 4294901760
    %1176 = vmatprep.subr.mxu0 %v1175
    %v1177 = vand.u32 %v49, 4294901760
    %v1178 = vsub.f32 %v49, %v1177
    %v1179 = vand.u32 %v1178, 4294901760
    %1180 = vmatpush1.xpose.msra.mxu0 %v1179
    %v1181 = vand.u32 %v52, 4294901760
    %v1182 = vsub.f32 %v52, %v1181
    %v1183 = vand.u32 %v1182, 4294901760
    %1184 = vmatprep.subr.mxu0 %v1183
    %v1185 = vand.u32 %v51, 4294901760
    %v1186 = vsub.f32 %v51, %v1185
    %v1187 = vand.u32 %v1186, 4294901760
    %1188 = vmatpush1.xpose.msra.mxu0 %v1187
    %v1189 = vand.u32 %v54, 4294901760
    %v1190 = vsub.f32 %v54, %v1189
    %v1191 = vand.u32 %v1190, 4294901760
    %1192 = vmatprep.subr.mxu0 %v1191
    %v1193 = vand.u32 %v53, 4294901760
    %v1194 = vsub.f32 %v53, %v1193
    %v1195 = vand.u32 %v1194, 4294901760
    %1196 = vmatpush1.xpose.msra.mxu0 %v1195
    %v1197 = vand.u32 %v56, 4294901760
    %v1198 = vsub.f32 %v56, %v1197
    %v1199 = vand.u32 %v1198, 4294901760
    %1200 = vmatprep.subr.mxu0 %v1199
    %v1201 = vand.u32 %v55, 4294901760
    %v1202 = vsub.f32 %v55, %v1201
    %v1203 = vand.u32 %v1202, 4294901760
    %1204 = vmatpush1.xpose.msra.mxu0 %v1203
    %v1205 = vand.u32 %v58, 4294901760
    %v1206 = vsub.f32 %v58, %v1205
    %v1207 = vand.u32 %v1206, 4294901760
    %1208 = vmatprep.subr.mxu0 %v1207
    %v1209 = vand.u32 %v57, 4294901760
    %v1210 = vsub.f32 %v57, %v1209
    %v1211 = vand.u32 %v1210, 4294901760
    %1212 = vmatpush1.xpose.msra.mxu0 %v1211
    %v1213 = vand.u32 %v60, 4294901760
    %v1214 = vsub.f32 %v60, %v1213
    %v1215 = vand.u32 %v1214, 4294901760
    %1216 = vmatprep.subr.mxu0 %v1215
    %v1217 = vand.u32 %v59, 4294901760
    %v1218 = vsub.f32 %v59, %v1217
    %v1219 = vand.u32 %v1218, 4294901760
    %1220 = vmatpush1.xpose.msra.mxu0 %v1219
    %v1221 = vand.u32 %v62, 4294901760
    %v1222 = vsub.f32 %v62, %v1221
    %v1223 = vand.u32 %v1222, 4294901760
    %1224 = vmatprep.subr.mxu0 %v1223
    %v1225 = vand.u32 %v61, 4294901760
    %v1226 = vsub.f32 %v61, %v1225
    %v1227 = vand.u32 %v1226, 4294901760
    %1228 = vmatpush1.xpose.msra.mxu0 %v1227
    %v1229 = vand.u32 %v64, 4294901760
    %v1230 = vsub.f32 %v64, %v1229
    %v1231 = vand.u32 %v1230, 4294901760
    %1232 = vmatprep.subr.mxu0 %v1231
    %v1233 = vand.u32 %v63, 4294901760
    %v1234 = vsub.f32 %v63, %v1233
    %v1235 = vand.u32 %v1234, 4294901760
    %1236 = vmatpush1.xpose.msra.mxu0 %v1235
    %v1237 = vand.u32 %v66, 4294901760
    %v1238 = vsub.f32 %v66, %v1237
    %v1239 = vand.u32 %v1238, 4294901760
    %1240 = vmatprep.subr.mxu0 %v1239
    %v1241 = vand.u32 %v65, 4294901760
    %v1242 = vsub.f32 %v65, %v1241
    %v1243 = vand.u32 %v1242, 4294901760
    %1244 = vmatpush1.xpose.msra.mxu0 %v1243
    %v1245 = vand.u32 %v68, 4294901760
    %v1246 = vsub.f32 %v68, %v1245
    %v1247 = vand.u32 %v1246, 4294901760
    %1248 = vmatprep.subr.mxu0 %v1247
    %v1249 = vand.u32 %v67, 4294901760
    %v1250 = vsub.f32 %v67, %v1249
    %v1251 = vand.u32 %v1250, 4294901760
    %1252 = vmatpush1.xpose.msra.mxu0 %v1251
    %v1253 = vand.u32 %v70, 4294901760
    %v1254 = vsub.f32 %v70, %v1253
    %v1255 = vand.u32 %v1254, 4294901760
    %1256 = vmatprep.subr.mxu0 %v1255
    %v1257 = vand.u32 %v69, 4294901760
    %v1258 = vsub.f32 %v69, %v1257
    %v1259 = vand.u32 %v1258, 4294901760
    %1260 = vmatpush1.xpose.msra.mxu0 %v1259
    %v1261 = vand.u32 %v72, 4294901760
    %v1262 = vsub.f32 %v72, %v1261
    %v1263 = vand.u32 %v1262, 4294901760
    %1264 = vmatprep.subr.mxu0 %v1263
    %v1265 = vand.u32 %v71, 4294901760
    %v1266 = vsub.f32 %v71, %v1265
    %v1267 = vand.u32 %v1266, 4294901760
    %1268 = vmatpush1.xpose.msra.mxu0 %v1267
    %v1269 = vand.u32 %v74, 4294901760
    %v1270 = vsub.f32 %v74, %v1269
    %v1271 = vand.u32 %v1270, 4294901760
    %1272 = vmatprep.subr.mxu0 %v1271
    %v1273 = vand.u32 %v73, 4294901760
    %v1274 = vsub.f32 %v73, %v1273
    %v1275 = vand.u32 %v1274, 4294901760
    %1276 = vmatpush1.xpose.msra.mxu0 %v1275
    %v1277 = vand.u32 %v76, 4294901760
    %v1278 = vsub.f32 %v76, %v1277
    %v1279 = vand.u32 %v1278, 4294901760
    %1280 = vmatprep.subr.mxu0 %v1279
    %v1281 = vand.u32 %v75, 4294901760
    %v1282 = vsub.f32 %v75, %v1281
    %v1283 = vand.u32 %v1282, 4294901760
    %1284 = vmatpush1.xpose.msra.mxu0 %v1283
    %v1285 = vand.u32 %v78, 4294901760
    %v1286 = vsub.f32 %v78, %v1285
    %v1287 = vand.u32 %v1286, 4294901760
    %1288 = vmatprep.subr.mxu0 %v1287
    %v1289 = vand.u32 %v77, 4294901760
    %v1290 = vsub.f32 %v77, %v1289
    %v1291 = vand.u32 %v1290, 4294901760
    %1292 = vmatpush1.xpose.msra.mxu0 %v1291
    %v1293 = vand.u32 %v80, 4294901760
    %v1294 = vsub.f32 %v80, %v1293
    %v1295 = vand.u32 %v1294, 4294901760
    %1296 = vmatprep.subr.mxu0 %v1295
    %v1297 = vand.u32 %v79, 4294901760
    %v1298 = vsub.f32 %v79, %v1297
    %v1299 = vand.u32 %v1298, 4294901760
    %1300 = vmatpush1.xpose.msra.mxu0 %v1299
    %v1301 = vand.u32 %v82, 4294901760
    %v1302 = vsub.f32 %v82, %v1301
    %v1303 = vand.u32 %v1302, 4294901760
    %1304 = vmatprep.subr.mxu0 %v1303
    %v1305 = vand.u32 %v81, 4294901760
    %v1306 = vsub.f32 %v81, %v1305
    %v1307 = vand.u32 %v1306, 4294901760
    %1308 = vmatpush1.xpose.msra.mxu0 %v1307
    %v1309 = vand.u32 %v84, 4294901760
    %v1310 = vsub.f32 %v84, %v1309
    %v1311 = vand.u32 %v1310, 4294901760
    %1312 = vmatprep.subr.mxu0 %v1311
    %v1313 = vand.u32 %v83, 4294901760
    %v1314 = vsub.f32 %v83, %v1313
    %v1315 = vand.u32 %v1314, 4294901760
    %1316 = vmatpush1.xpose.msra.mxu0 %v1315
    %v1317 = vand.u32 %v86, 4294901760
    %v1318 = vsub.f32 %v86, %v1317
    %v1319 = vand.u32 %v1318, 4294901760
    %1320 = vmatprep.subr.mxu0 %v1319
    %v1321 = vand.u32 %v85, 4294901760
    %v1322 = vsub.f32 %v85, %v1321
    %v1323 = vand.u32 %v1322, 4294901760
    %1324 = vmatpush1.xpose.msra.mxu0 %v1323
    %v1325 = vand.u32 %v88, 4294901760
    %v1326 = vsub.f32 %v88, %v1325
    %v1327 = vand.u32 %v1326, 4294901760
    %1328 = vmatprep.subr.mxu0 %v1327
    %v1329 = vand.u32 %v87, 4294901760
    %v1330 = vsub.f32 %v87, %v1329
    %v1331 = vand.u32 %v1330, 4294901760
    %1332 = vmatpush1.xpose.msra.mxu0 %v1331
    %v1333 = vand.u32 %v90, 4294901760
    %v1334 = vsub.f32 %v90, %v1333
    %v1335 = vand.u32 %v1334, 4294901760
    %1336 = vmatprep.subr.mxu0 %v1335
    %v1337 = vand.u32 %v89, 4294901760
    %v1338 = vsub.f32 %v89, %v1337
    %v1339 = vand.u32 %v1338, 4294901760
    %1340 = vmatpush1.xpose.msra.mxu0 %v1339
    %v1341 = vand.u32 %v92, 4294901760
    %v1342 = vsub.f32 %v92, %v1341
    %v1343 = vand.u32 %v1342, 4294901760
    %1344 = vmatprep.subr.mxu0 %v1343
    %v1345 = vand.u32 %v91, 4294901760
    %v1346 = vsub.f32 %v91, %v1345
    %v1347 = vand.u32 %v1346, 4294901760
    %1348 = vmatpush1.xpose.msra.mxu0 %v1347
    %v1349 = vand.u32 %v94, 4294901760
    %v1350 = vsub.f32 %v94, %v1349
    %v1351 = vand.u32 %v1350, 4294901760
    %1352 = vmatprep.subr.mxu0 %v1351
    %v1353 = vand.u32 %v93, 4294901760
    %v1354 = vsub.f32 %v93, %v1353
    %v1355 = vand.u32 %v1354, 4294901760
    %1356 = vmatpush1.xpose.msra.mxu0 %v1355
    %v1357 = vand.u32 %v96, 4294901760
    %v1358 = vsub.f32 %v96, %v1357
    %v1359 = vand.u32 %v1358, 4294901760
    %1360 = vmatprep.subr.mxu0 %v1359
    %v1361 = vand.u32 %v95, 4294901760
    %v1362 = vsub.f32 %v95, %v1361
    %v1363 = vand.u32 %v1362, 4294901760
    %1364 = vmatpush1.xpose.msra.mxu0 %v1363
    %v1365 = vand.u32 %v98, 4294901760
    %v1366 = vsub.f32 %v98, %v1365
    %v1367 = vand.u32 %v1366, 4294901760
    %1368 = vmatprep.subr.mxu0 %v1367
    %v1369 = vand.u32 %v97, 4294901760
    %v1370 = vsub.f32 %v97, %v1369
    %v1371 = vand.u32 %v1370, 4294901760
    %1372 = vmatpush1.xpose.msra.mxu0 %v1371
    %v1373 = vand.u32 %v100, 4294901760
    %v1374 = vsub.f32 %v100, %v1373
    %v1375 = vand.u32 %v1374, 4294901760
    %1376 = vmatprep.subr.mxu0 %v1375
    %v1377 = vand.u32 %v99, 4294901760
    %v1378 = vsub.f32 %v99, %v1377
    %v1379 = vand.u32 %v1378, 4294901760
    %1380 = vmatpush1.xpose.msra.mxu0 %v1379
    %v1381 = vand.u32 %v102, 4294901760
    %v1382 = vsub.f32 %v102, %v1381
    %v1383 = vand.u32 %v1382, 4294901760
    %1384 = vmatprep.subr.mxu0 %v1383
    %v1385 = vand.u32 %v101, 4294901760
    %v1386 = vsub.f32 %v101, %v1385
    %v1387 = vand.u32 %v1386, 4294901760
    %1388 = vmatpush1.xpose.msra.mxu0 %v1387
    %v1389 = vand.u32 %v104, 4294901760
    %v1390 = vsub.f32 %v104, %v1389
    %v1391 = vand.u32 %v1390, 4294901760
    %1392 = vmatprep.subr.mxu0 %v1391
    %v1393 = vand.u32 %v103, 4294901760
    %v1394 = vsub.f32 %v103, %v1393
    %v1395 = vand.u32 %v1394, 4294901760
    %1396 = vmatpush1.xpose.msra.mxu0 %v1395
    %v1397 = vand.u32 %v106, 4294901760
    %v1398 = vsub.f32 %v106, %v1397
    %v1399 = vand.u32 %v1398, 4294901760
    %1400 = vmatprep.subr.mxu0 %v1399
    %v1401 = vand.u32 %v105, 4294901760
    %v1402 = vsub.f32 %v105, %v1401
    %v1403 = vand.u32 %v1402, 4294901760
    %1404 = vmatpush1.xpose.msra.mxu0 %v1403
    %v1405 = vand.u32 %v108, 4294901760
    %v1406 = vsub.f32 %v108, %v1405
    %v1407 = vand.u32 %v1406, 4294901760
    %1408 = vmatprep.subr.mxu0 %v1407
    %v1409 = vand.u32 %v107, 4294901760
    %v1410 = vsub.f32 %v107, %v1409
    %v1411 = vand.u32 %v1410, 4294901760
    %1412 = vmatpush1.xpose.msra.mxu0 %v1411
    %v1413 = vand.u32 %v110, 4294901760
    %v1414 = vsub.f32 %v110, %v1413
    %v1415 = vand.u32 %v1414, 4294901760
    %1416 = vmatprep.subr.mxu0 %v1415
    %v1417 = vand.u32 %v109, 4294901760
    %v1418 = vsub.f32 %v109, %v1417
    %v1419 = vand.u32 %v1418, 4294901760
    %1420 = vmatpush1.xpose.msra.mxu0 %v1419
    %v1421 = vand.u32 %v112, 4294901760
    %v1422 = vsub.f32 %v112, %v1421
    %v1423 = vand.u32 %v1422, 4294901760
    %1424 = vmatprep.subr.mxu0 %v1423
    %v1425 = vand.u32 %v111, 4294901760
    %v1426 = vsub.f32 %v111, %v1425
    %v1427 = vand.u32 %v1426, 4294901760
    %1428 = vmatpush1.xpose.msra.mxu0 %v1427
    %v1429 = vand.u32 %v44, 4294901760
    %1430 = vmatprep.mubr.f32.mxu0 %v1429
    %v1431 = vand.u32 %v43, 4294901760
    %1432 = vmatmul.mubr.f32.gmra.mrb[0].mxu0 %v1431
    %v1433 = vpop.f32.mrb[0].mxu0
    %v1434 = vadd.f32 %v1145, %v1433
    %v1435 = vpop.f32.mrb[0].mxu0
    %v1436 = vadd.f32 %v1147, %v1435
    %v1437 = vand.u32 %v46, 4294901760
    %1438 = vmatprep.mubr.f32.mxu0 %v1437
    %v1439 = vand.u32 %v45, 4294901760
    %1440 = vmatmul.mubr.f32.gmra.mrb[0].mxu0 %v1439
    %v1441 = vpop.f32.mrb[0].mxu0
    %v1442 = vadd.f32 %v1157, %v1441
    %v1443 = vpop.f32.mrb[0].mxu0
    %v1444 = vadd.f32 %v1159, %v1443
    %v1445 = vand.u32 %v48, 4294901760
    %1446 = vmatprep.mubr.f32.mxu0 %v1445
    %v1447 = vand.u32 %v47, 4294901760
    %1448 = vmatmul.mubr.f32.gmra.mrb[0].mxu0 %v1447
    %v1449 = vpop.f32.mrb[0].mxu0
    %v1450 = vadd.f32 %v1169, %v1449
    %v1451 = vpop.f32.mrb[0].mxu0
    %v1452 = vadd.f32 %v1171, %v1451
    %1453 = vdwg.mxu0
    %v1454 = vand.u32 %v50, 4294901760
    %1455 = vmatprep.subr.mxu0 %v1454
    %v1456 = vand.u32 %v49, 4294901760
    %1457 = vmatpush1.xpose.msra.mxu0 %v1456
    %v1458 = vand.u32 %v52, 4294901760
    %1459 = vmatprep.subr.mxu0 %v1458
    %v1460 = vand.u32 %v51, 4294901760
    %1461 = vmatpush1.xpose.msra.mxu0 %v1460
    %v1462 = vand.u32 %v54, 4294901760
    %1463 = vmatprep.subr.mxu0 %v1462
    %v1464 = vand.u32 %v53, 4294901760
    %1465 = vmatpush1.xpose.msra.mxu0 %v1464
    %v1466 = vand.u32 %v56, 4294901760
    %1467 = vmatprep.subr.mxu0 %v1466
    %v1468 = vand.u32 %v55, 4294901760
    %1469 = vmatpush1.xpose.msra.mxu0 %v1468
    %v1470 = vand.u32 %v58, 4294901760
    %1471 = vmatprep.subr.mxu0 %v1470
    %v1472 = vand.u32 %v57, 4294901760
    %1473 = vmatpush1.xpose.msra.mxu0 %v1472
    %v1474 = vand.u32 %v60, 4294901760
    %1475 = vmatprep.subr.mxu0 %v1474
    %v1476 = vand.u32 %v59, 4294901760
    %1477 = vmatpush1.xpose.msra.mxu0 %v1476
    %v1478 = vand.u32 %v62, 4294901760
    %1479 = vmatprep.subr.mxu0 %v1478
    %v1480 = vand.u32 %v61, 4294901760
    %1481 = vmatpush1.xpose.msra.mxu0 %v1480
    %v1482 = vand.u32 %v64, 4294901760
    %1483 = vmatprep.subr.mxu0 %v1482
    %v1484 = vand.u32 %v63, 4294901760
    %1485 = vmatpush1.xpose.msra.mxu0 %v1484
    %v1486 = vand.u32 %v66, 4294901760
    %1487 = vmatprep.subr.mxu0 %v1486
    %v1488 = vand.u32 %v65, 4294901760
    %1489 = vmatpush1.xpose.msra.mxu0 %v1488
    %v1490 = vand.u32 %v68, 4294901760
    %1491 = vmatprep.subr.mxu0 %v1490
    %v1492 = vand.u32 %v67, 4294901760
    %1493 = vmatpush1.xpose.msra.mxu0 %v1492
    %v1494 = vand.u32 %v70, 4294901760
    %1495 = vmatprep.subr.mxu0 %v1494
    %v1496 = vand.u32 %v69, 4294901760
    %1497 = vmatpush1.xpose.msra.mxu0 %v1496
    %v1498 = vand.u32 %v72, 4294901760
    %1499 = vmatprep.subr.mxu0 %v1498
    %v1500 = vand.u32 %v71, 4294901760
    %1501 = vmatpush1.xpose.msra.mxu0 %v1500
    %v1502 = vand.u32 %v74, 4294901760
    %1503 = vmatprep.subr.mxu0 %v1502
    %v1504 = vand.u32 %v73, 4294901760
    %1505 = vmatpush1.xpose.msra.mxu0 %v1504
    %v1506 = vand.u32 %v76, 4294901760
    %1507 = vmatprep.subr.mxu0 %v1506
    %v1508 = vand.u32 %v75, 4294901760
    %1509 = vmatpush1.xpose.msra.mxu0 %v1508
    %v1510 = vand.u32 %v78, 4294901760
    %1511 = vmatprep.subr.mxu0 %v1510
    %v1512 = vand.u32 %v77, 4294901760
    %1513 = vmatpush1.xpose.msra.mxu0 %v1512
    %v1514 = vand.u32 %v80, 4294901760
    %1515 = vmatprep.subr.mxu0 %v1514
    %v1516 = vand.u32 %v79, 4294901760
    %1517 = vmatpush1.xpose.msra.mxu0 %v1516
    %v1518 = vand.u32 %v82, 4294901760
    %1519 = vmatprep.subr.mxu0 %v1518
    %v1520 = vand.u32 %v81, 4294901760
    %1521 = vmatpush1.xpose.msra.mxu0 %v1520
    %v1522 = vand.u32 %v84, 4294901760
    %1523 = vmatprep.subr.mxu0 %v1522
    %v1524 = vand.u32 %v83, 4294901760
    %1525 = vmatpush1.xpose.msra.mxu0 %v1524
    %v1526 = vand.u32 %v86, 4294901760
    %1527 = vmatprep.subr.mxu0 %v1526
    %v1528 = vand.u32 %v85, 4294901760
    %1529 = vmatpush1.xpose.msra.mxu0 %v1528
    %v1530 = vand.u32 %v88, 4294901760
    %1531 = vmatprep.subr.mxu0 %v1530
    %v1532 = vand.u32 %v87, 4294901760
    %1533 = vmatpush1.xpose.msra.mxu0 %v1532
    %v1534 = vand.u32 %v90, 4294901760
    %1535 = vmatprep.subr.mxu0 %v1534
    %v1536 = vand.u32 %v89, 4294901760
    %1537 = vmatpush1.xpose.msra.mxu0 %v1536
    %v1538 = vand.u32 %v92, 4294901760
    %1539 = vmatprep.subr.mxu0 %v1538
    %v1540 = vand.u32 %v91, 4294901760
    %1541 = vmatpush1.xpose.msra.mxu0 %v1540
    %v1542 = vand.u32 %v94, 4294901760
    %1543 = vmatprep.subr.mxu0 %v1542
    %v1544 = vand.u32 %v93, 4294901760
    %1545 = vmatpush1.xpose.msra.mxu0 %v1544
    %v1546 = vand.u32 %v96, 4294901760
    %1547 = vmatprep.subr.mxu0 %v1546
    %v1548 = vand.u32 %v95, 4294901760
    %1549 = vmatpush1.xpose.msra.mxu0 %v1548
    %v1550 = vand.u32 %v98, 4294901760
    %1551 = vmatprep.subr.mxu0 %v1550
    %v1552 = vand.u32 %v97, 4294901760
    %1553 = vmatpush1.xpose.msra.mxu0 %v1552
    %v1554 = vand.u32 %v100, 4294901760
    %1555 = vmatprep.subr.mxu0 %v1554
    %v1556 = vand.u32 %v99, 4294901760
    %1557 = vmatpush1.xpose.msra.mxu0 %v1556
    %v1558 = vand.u32 %v102, 4294901760
    %1559 = vmatprep.subr.mxu0 %v1558
    %v1560 = vand.u32 %v101, 4294901760
    %1561 = vmatpush1.xpose.msra.mxu0 %v1560
    %v1562 = vand.u32 %v104, 4294901760
    %1563 = vmatprep.subr.mxu0 %v1562
    %v1564 = vand.u32 %v103, 4294901760
    %1565 = vmatpush1.xpose.msra.mxu0 %v1564
    %v1566 = vand.u32 %v106, 4294901760
    %1567 = vmatprep.subr.mxu0 %v1566
    %v1568 = vand.u32 %v105, 4294901760
    %1569 = vmatpush1.xpose.msra.mxu0 %v1568
    %v1570 = vand.u32 %v108, 4294901760
    %1571 = vmatprep.subr.mxu0 %v1570
    %v1572 = vand.u32 %v107, 4294901760
    %1573 = vmatpush1.xpose.msra.mxu0 %v1572
    %v1574 = vand.u32 %v110, 4294901760
    %1575 = vmatprep.subr.mxu0 %v1574
    %v1576 = vand.u32 %v109, 4294901760
    %1577 = vmatpush1.xpose.msra.mxu0 %v1576
    %v1578 = vand.u32 %v112, 4294901760
    %1579 = vmatprep.subr.mxu0 %v1578
    %v1580 = vand.u32 %v111, 4294901760
    %1581 = vmatpush1.xpose.msra.mxu0 %v1580
    %v1582 = vand.u32 %v44, 4294901760
    %1583 = vmatprep.mubr.f32.mxu0 %v1582
    %v1584 = vand.u32 %v43, 4294901760
    %1585 = vmatmul.mubr.f32.gmra.mrb[0].mxu0 %v1584
    %v1586 = vpop.f32.mrb[0].mxu0
    %v1587 = vadd.f32 %v1434, %v1586
    %v1588 = vpop.f32.mrb[0].mxu0
    %v1589 = vadd.f32 %v1436, %v1588
    %v1590 = vand.u32 %v46, 4294901760
    %1591 = vmatprep.mubr.f32.mxu0 %v1590
    %v1592 = vand.u32 %v45, 4294901760
    %1593 = vmatmul.mubr.f32.gmra.mrb[0].mxu0 %v1592
    %v1594 = vpop.f32.mrb[0].mxu0
    %v1595 = vadd.f32 %v1442, %v1594
    %v1596 = vpop.f32.mrb[0].mxu0
    %v1597 = vadd.f32 %v1444, %v1596
    %v1598 = vand.u32 %v48, 4294901760
    %1599 = vmatprep.mubr.f32.mxu0 %v1598
    %v1600 = vand.u32 %v47, 4294901760
    %1601 = vmatmul.mubr.f32.gmra.mrb[0].mxu0 %v1600
    %v1602 = vpop.f32.mrb[0].mxu0
    %v1603 = vadd.f32 %v1450, %v1602
    %v1604 = vpop.f32.mrb[0].mxu0
    %v1605 = vadd.f32 %v1452, %v1604
    %1606 = vdwg.mxu0
    %v1607 = vand.u32 %v114, 4294901760
    %1608 = vmatprep.subr.mxu0 %v1607
    %v1609 = vand.u32 %v113, 4294901760
    %1610 = vmatpush1.xpose.msra.mxu0 %v1609
    %v1611 = vand.u32 %v116, 4294901760
    %1612 = vmatprep.subr.mxu0 %v1611
    %v1613 = vand.u32 %v115, 4294901760
    %1614 = vmatpush1.xpose.msra.mxu0 %v1613
    %v1615 = vand.u32 %v118, 4294901760
    %1616 = vmatprep.subr.mxu0 %v1615
    %v1617 = vand.u32 %v117, 4294901760
    %1618 = vmatpush1.xpose.msra.mxu0 %v1617
    %v1619 = vand.u32 %v120, 4294901760
    %1620 = vmatprep.subr.mxu0 %v1619
    %v1621 = vand.u32 %v119, 4294901760
    %1622 = vmatpush1.xpose.msra.mxu0 %v1621
    %v1623 = vand.u32 %v122, 4294901760
    %1624 = vmatprep.subr.mxu0 %v1623
    %v1625 = vand.u32 %v121, 4294901760
    %1626 = vmatpush1.xpose.msra.mxu0 %v1625
    %v1627 = vand.u32 %v124, 4294901760
    %1628 = vmatprep.subr.mxu0 %v1627
    %v1629 = vand.u32 %v123, 4294901760
    %1630 = vmatpush1.xpose.msra.mxu0 %v1629
    %v1631 = vand.u32 %v126, 4294901760
    %1632 = vmatprep.subr.mxu0 %v1631
    %v1633 = vand.u32 %v125, 4294901760
    %1634 = vmatpush1.xpose.msra.mxu0 %v1633
    %v1635 = vand.u32 %v128, 4294901760
    %1636 = vmatprep.subr.mxu0 %v1635
    %v1637 = vand.u32 %v127, 4294901760
    %1638 = vmatpush1.xpose.msra.mxu0 %v1637
    %v1639 = vand.u32 %v130, 4294901760
    %1640 = vmatprep.subr.mxu0 %v1639
    %v1641 = vand.u32 %v129, 4294901760
    %1642 = vmatpush1.xpose.msra.mxu0 %v1641
    %v1643 = vand.u32 %v132, 4294901760
    %1644 = vmatprep.subr.mxu0 %v1643
    %v1645 = vand.u32 %v131, 4294901760
    %1646 = vmatpush1.xpose.msra.mxu0 %v1645
    %v1647 = vand.u32 %v134, 4294901760
    %1648 = vmatprep.subr.mxu0 %v1647
    %v1649 = vand.u32 %v133, 4294901760
    %1650 = vmatpush1.xpose.msra.mxu0 %v1649
    %v1651 = vand.u32 %v136, 4294901760
    %1652 = vmatprep.subr.mxu0 %v1651
    %v1653 = vand.u32 %v135, 4294901760
    %1654 = vmatpush1.xpose.msra.mxu0 %v1653
    %v1655 = vand.u32 %v138, 4294901760
    %1656 = vmatprep.subr.mxu0 %v1655
    %v1657 = vand.u32 %v137, 4294901760
    %1658 = vmatpush1.xpose.msra.mxu0 %v1657
    %v1659 = vand.u32 %v140, 4294901760
    %1660 = vmatprep.subr.mxu0 %v1659
    %v1661 = vand.u32 %v139, 4294901760
    %1662 = vmatpush1.xpose.msra.mxu0 %v1661
    %v1663 = vand.u32 %v142, 4294901760
    %1664 = vmatprep.subr.mxu0 %v1663
    %v1665 = vand.u32 %v141, 4294901760
    %1666 = vmatpush1.xpose.msra.mxu0 %v1665
    %v1667 = vand.u32 %v144, 4294901760
    %1668 = vmatprep.subr.mxu0 %v1667
    %v1669 = vand.u32 %v143, 4294901760
    %1670 = vmatpush1.xpose.msra.mxu0 %v1669
    %v1671 = vand.u32 %v146, 4294901760
    %1672 = vmatprep.subr.mxu0 %v1671
    %v1673 = vand.u32 %v145, 4294901760
    %1674 = vmatpush1.xpose.msra.mxu0 %v1673
    %v1675 = vand.u32 %v148, 4294901760
    %1676 = vmatprep.subr.mxu0 %v1675
    %v1677 = vand.u32 %v147, 4294901760
    %1678 = vmatpush1.xpose.msra.mxu0 %v1677
    %v1679 = vand.u32 %v150, 4294901760
    %1680 = vmatprep.subr.mxu0 %v1679
    %v1681 = vand.u32 %v149, 4294901760
    %1682 = vmatpush1.xpose.msra.mxu0 %v1681
    %v1683 = vand.u32 %v152, 4294901760
    %1684 = vmatprep.subr.mxu0 %v1683
    %v1685 = vand.u32 %v151, 4294901760
    %1686 = vmatpush1.xpose.msra.mxu0 %v1685
    %v1687 = vand.u32 %v154, 4294901760
    %1688 = vmatprep.subr.mxu0 %v1687
    %v1689 = vand.u32 %v153, 4294901760
    %1690 = vmatpush1.xpose.msra.mxu0 %v1689
    %v1691 = vand.u32 %v156, 4294901760
    %1692 = vmatprep.subr.mxu0 %v1691
    %v1693 = vand.u32 %v155, 4294901760
    %1694 = vmatpush1.xpose.msra.mxu0 %v1693
    %v1695 = vand.u32 %v158, 4294901760
    %1696 = vmatprep.subr.mxu0 %v1695
    %v1697 = vand.u32 %v157, 4294901760
    %1698 = vmatpush1.xpose.msra.mxu0 %v1697
    %v1699 = vand.u32 %v160, 4294901760
    %1700 = vmatprep.subr.mxu0 %v1699
    %v1701 = vand.u32 %v159, 4294901760
    %1702 = vmatpush1.xpose.msra.mxu0 %v1701
    %v1703 = vand.u32 %v162, 4294901760
    %1704 = vmatprep.subr.mxu0 %v1703
    %v1705 = vand.u32 %v161, 4294901760
    %1706 = vmatpush1.xpose.msra.mxu0 %v1705
    %v1707 = vand.u32 %v164, 4294901760
    %1708 = vmatprep.subr.mxu0 %v1707
    %v1709 = vand.u32 %v163, 4294901760
    %1710 = vmatpush1.xpose.msra.mxu0 %v1709
    %v1711 = vand.u32 %v166, 4294901760
    %1712 = vmatprep.subr.mxu0 %v1711
    %v1713 = vand.u32 %v165, 4294901760
    %1714 = vmatpush1.xpose.msra.mxu0 %v1713
    %v1715 = vand.u32 %v168, 4294901760
    %1716 = vmatprep.subr.mxu0 %v1715
    %v1717 = vand.u32 %v167, 4294901760
    %1718 = vmatpush1.xpose.msra.mxu0 %v1717
    %v1719 = vand.u32 %v170, 4294901760
    %1720 = vmatprep.subr.mxu0 %v1719
    %v1721 = vand.u32 %v169, 4294901760
    %1722 = vmatpush1.xpose.msra.mxu0 %v1721
    %v1723 = vand.u32 %v172, 4294901760
    %1724 = vmatprep.subr.mxu0 %v1723
    %v1725 = vand.u32 %v171, 4294901760
    %1726 = vmatpush1.xpose.msra.mxu0 %v1725
    %v1727 = vand.u32 %v174, 4294901760
    %1728 = vmatprep.subr.mxu0 %v1727
    %v1729 = vand.u32 %v173, 4294901760
    %1730 = vmatpush1.xpose.msra.mxu0 %v1729
    %v1731 = vand.u32 %v176, 4294901760
    %1732 = vmatprep.subr.mxu0 %v1731
    %v1733 = vand.u32 %v175, 4294901760
    %1734 = vmatpush1.xpose.msra.mxu0 %v1733
    %v1735 = vand.u32 %v44, 4294901760
    %v1736 = vsub.f32 %v44, %v1735
    %v1737 = vand.u32 %v1736, 4294901760
    %v1738 = vsub.f32 %v1736, %v1737
    %v1739 = vand.u32 %v1738, 4294901760
    %1740 = vmatprep.mubr.f32.mxu0 %v1739
    %v1741 = vand.u32 %v43, 4294901760
    %v1742 = vsub.f32 %v43, %v1741
    %v1743 = vand.u32 %v1742, 4294901760
    %v1744 = vsub.f32 %v1742, %v1743
    %v1745 = vand.u32 %v1744, 4294901760
    %1746 = vmatmul.mubr.f32.gmra.mrb[0].mxu0 %v1745
    %v1747 = vpop.f32.mrb[0].mxu0
    %v1748 = vadd.f32 %v190, %v1747
    %v1749 = vpop.f32.mrb[0].mxu0
    %v1750 = vadd.f32 %v194, %v1749
    %v1751 = vand.u32 %v46, 4294901760
    %v1752 = vsub.f32 %v46, %v1751
    %v1753 = vand.u32 %v1752, 4294901760
    %v1754 = vsub.f32 %v1752, %v1753
    %v1755 = vand.u32 %v1754, 4294901760
    %1756 = vmatprep.mubr.f32.mxu0 %v1755
    %v1757 = vand.u32 %v45, 4294901760
    %v1758 = vsub.f32 %v45, %v1757
    %v1759 = vand.u32 %v1758, 4294901760
    %v1760 = vsub.f32 %v1758, %v1759
    %v1761 = vand.u32 %v1760, 4294901760
    %1762 = vmatmul.mubr.f32.gmra.mrb[0].mxu0 %v1761
    %v1763 = vpop.f32.mrb[0].mxu0
    %v1764 = vadd.f32 %v190, %v1763
    %v1765 = vpop.f32.mrb[0].mxu0
    %v1766 = vadd.f32 %v194, %v1765
    %v1767 = vand.u32 %v48, 4294901760
    %v1768 = vsub.f32 %v48, %v1767
    %v1769 = vand.u32 %v1768, 4294901760
    %v1770 = vsub.f32 %v1768, %v1769
    %v1771 = vand.u32 %v1770, 4294901760
    %1772 = vmatprep.mubr.f32.mxu0 %v1771
    %v1773 = vand.u32 %v47, 4294901760
    %v1774 = vsub.f32 %v47, %v1773
    %v1775 = vand.u32 %v1774, 4294901760
    %v1776 = vsub.f32 %v1774, %v1775
    %v1777 = vand.u32 %v1776, 4294901760
    %1778 = vmatmul.mubr.f32.gmra.mrb[0].mxu0 %v1777
    %v1779 = vpop.f32.mrb[0].mxu0
    %v1780 = vadd.f32 %v190, %v1779
    %v1781 = vpop.f32.mrb[0].mxu0
    %v1782 = vadd.f32 %v194, %v1781
    %1783 = vdwg.mxu0
    %v1784 = vand.u32 %v114, 4294901760
    %v1785 = vsub.f32 %v114, %v1784
    %v1786 = vand.u32 %v1785, 4294901760
    %v1787 = vsub.f32 %v1785, %v1786
    %v1788 = vand.u32 %v1787, 4294901760
    %1789 = vmatprep.subr.mxu0 %v1788
    %v1790 = vand.u32 %v113, 4294901760
    %v1791 = vsub.f32 %v113, %v1790
    %v1792 = vand.u32 %v1791, 4294901760
    %v1793 = vsub.f32 %v1791, %v1792
    %v1794 = vand.u32 %v1793, 4294901760
    %1795 = vmatpush1.xpose.msra.mxu0 %v1794
    %v1796 = vand.u32 %v116, 4294901760
    %v1797 = vsub.f32 %v116, %v1796
    %v1798 = vand.u32 %v1797, 4294901760
    %v1799 = vsub.f32 %v1797, %v1798
    %v1800 = vand.u32 %v1799, 4294901760
    %1801 = vmatprep.subr.mxu0 %v1800
    %v1802 = vand.u32 %v115, 4294901760
    %v1803 = vsub.f32 %v115, %v1802
    %v1804 = vand.u32 %v1803, 4294901760
    %v1805 = vsub.f32 %v1803, %v1804
    %v1806 = vand.u32 %v1805, 4294901760
    %1807 = vmatpush1.xpose.msra.mxu0 %v1806
    %v1808 = vand.u32 %v118, 4294901760
    %v1809 = vsub.f32 %v118, %v1808
    %v1810 = vand.u32 %v1809, 4294901760
    %v1811 = vsub.f32 %v1809, %v1810
    %v1812 = vand.u32 %v1811, 4294901760
    %1813 = vmatprep.subr.mxu0 %v1812
    %v1814 = vand.u32 %v117, 4294901760
    %v1815 = vsub.f32 %v117, %v1814
    %v1816 = vand.u32 %v1815, 4294901760
    %v1817 = vsub.f32 %v1815, %v1816
    %v1818 = vand.u32 %v1817, 4294901760
    %1819 = vmatpush1.xpose.msra.mxu0 %v1818
    %v1820 = vand.u32 %v120, 4294901760
    %v1821 = vsub.f32 %v120, %v1820
    %v1822 = vand.u32 %v1821, 4294901760
    %v1823 = vsub.f32 %v1821, %v1822
    %v1824 = vand.u32 %v1823, 4294901760
    %1825 = vmatprep.subr.mxu0 %v1824
    %v1826 = vand.u32 %v119, 4294901760
    %v1827 = vsub.f32 %v119, %v1826
    %v1828 = vand.u32 %v1827, 4294901760
    %v1829 = vsub.f32 %v1827, %v1828
    %v1830 = vand.u32 %v1829, 4294901760
    %1831 = vmatpush1.xpose.msra.mxu0 %v1830
    %v1832 = vand.u32 %v122, 4294901760
    %v1833 = vsub.f32 %v122, %v1832
    %v1834 = vand.u32 %v1833, 4294901760
    %v1835 = vsub.f32 %v1833, %v1834
    %v1836 = vand.u32 %v1835, 4294901760
    %1837 = vmatprep.subr.mxu0 %v1836
    %v1838 = vand.u32 %v121, 4294901760
    %v1839 = vsub.f32 %v121, %v1838
    %v1840 = vand.u32 %v1839, 4294901760
    %v1841 = vsub.f32 %v1839, %v1840
    %v1842 = vand.u32 %v1841, 4294901760
    %1843 = vmatpush1.xpose.msra.mxu0 %v1842
    %v1844 = vand.u32 %v124, 4294901760
    %v1845 = vsub.f32 %v124, %v1844
    %v1846 = vand.u32 %v1845, 4294901760
    %v1847 = vsub.f32 %v1845, %v1846
    %v1848 = vand.u32 %v1847, 4294901760
    %1849 = vmatprep.subr.mxu0 %v1848
    %v1850 = vand.u32 %v123, 4294901760
    %v1851 = vsub.f32 %v123, %v1850
    %v1852 = vand.u32 %v1851, 4294901760
    %v1853 = vsub.f32 %v1851, %v1852
    %v1854 = vand.u32 %v1853, 4294901760
    %1855 = vmatpush1.xpose.msra.mxu0 %v1854
    %v1856 = vand.u32 %v126, 4294901760
    %v1857 = vsub.f32 %v126, %v1856
    %v1858 = vand.u32 %v1857, 4294901760
    %v1859 = vsub.f32 %v1857, %v1858
    %v1860 = vand.u32 %v1859, 4294901760
    %1861 = vmatprep.subr.mxu0 %v1860
    %v1862 = vand.u32 %v125, 4294901760
    %v1863 = vsub.f32 %v125, %v1862
    %v1864 = vand.u32 %v1863, 4294901760
    %v1865 = vsub.f32 %v1863, %v1864
    %v1866 = vand.u32 %v1865, 4294901760
    %1867 = vmatpush1.xpose.msra.mxu0 %v1866
    %v1868 = vand.u32 %v128, 4294901760
    %v1869 = vsub.f32 %v128, %v1868
    %v1870 = vand.u32 %v1869, 4294901760
    %v1871 = vsub.f32 %v1869, %v1870
    %v1872 = vand.u32 %v1871, 4294901760
    %1873 = vmatprep.subr.mxu0 %v1872
    %v1874 = vand.u32 %v127, 4294901760
    %v1875 = vsub.f32 %v127, %v1874
    %v1876 = vand.u32 %v1875, 4294901760
    %v1877 = vsub.f32 %v1875, %v1876
    %v1878 = vand.u32 %v1877, 4294901760
    %1879 = vmatpush1.xpose.msra.mxu0 %v1878
    %v1880 = vand.u32 %v130, 4294901760
    %v1881 = vsub.f32 %v130, %v1880
    %v1882 = vand.u32 %v1881, 4294901760
    %v1883 = vsub.f32 %v1881, %v1882
    %v1884 = vand.u32 %v1883, 4294901760
    %1885 = vmatprep.subr.mxu0 %v1884
    %v1886 = vand.u32 %v129, 4294901760
    %v1887 = vsub.f32 %v129, %v1886
    %v1888 = vand.u32 %v1887, 4294901760
    %v1889 = vsub.f32 %v1887, %v1888
    %v1890 = vand.u32 %v1889, 4294901760
    %1891 = vmatpush1.xpose.msra.mxu0 %v1890
    %v1892 = vand.u32 %v132, 4294901760
    %v1893 = vsub.f32 %v132, %v1892
    %v1894 = vand.u32 %v1893, 4294901760
    %v1895 = vsub.f32 %v1893, %v1894
    %v1896 = vand.u32 %v1895, 4294901760
    %1897 = vmatprep.subr.mxu0 %v1896
    %v1898 = vand.u32 %v131, 4294901760
    %v1899 = vsub.f32 %v131, %v1898
    %v1900 = vand.u32 %v1899, 4294901760
    %v1901 = vsub.f32 %v1899, %v1900
    %v1902 = vand.u32 %v1901, 4294901760
    %1903 = vmatpush1.xpose.msra.mxu0 %v1902
    %v1904 = vand.u32 %v134, 4294901760
    %v1905 = vsub.f32 %v134, %v1904
    %v1906 = vand.u32 %v1905, 4294901760
    %v1907 = vsub.f32 %v1905, %v1906
    %v1908 = vand.u32 %v1907, 4294901760
    %1909 = vmatprep.subr.mxu0 %v1908
    %v1910 = vand.u32 %v133, 4294901760
    %v1911 = vsub.f32 %v133, %v1910
    %v1912 = vand.u32 %v1911, 4294901760
    %v1913 = vsub.f32 %v1911, %v1912
    %v1914 = vand.u32 %v1913, 4294901760
    %1915 = vmatpush1.xpose.msra.mxu0 %v1914
    %v1916 = vand.u32 %v136, 4294901760
    %v1917 = vsub.f32 %v136, %v1916
    %v1918 = vand.u32 %v1917, 4294901760
    %v1919 = vsub.f32 %v1917, %v1918
    %v1920 = vand.u32 %v1919, 4294901760
    %1921 = vmatprep.subr.mxu0 %v1920
    %v1922 = vand.u32 %v135, 4294901760
    %v1923 = vsub.f32 %v135, %v1922
    %v1924 = vand.u32 %v1923, 4294901760
    %v1925 = vsub.f32 %v1923, %v1924
    %v1926 = vand.u32 %v1925, 4294901760
    %1927 = vmatpush1.xpose.msra.mxu0 %v1926
    %v1928 = vand.u32 %v138, 4294901760
    %v1929 = vsub.f32 %v138, %v1928
    %v1930 = vand.u32 %v1929, 4294901760
    %v1931 = vsub.f32 %v1929, %v1930
    %v1932 = vand.u32 %v1931, 4294901760
    %1933 = vmatprep.subr.mxu0 %v1932
    %v1934 = vand.u32 %v137, 4294901760
    %v1935 = vsub.f32 %v137, %v1934
    %v1936 = vand.u32 %v1935, 4294901760
    %v1937 = vsub.f32 %v1935, %v1936
    %v1938 = vand.u32 %v1937, 4294901760
    %1939 = vmatpush1.xpose.msra.mxu0 %v1938
    %v1940 = vand.u32 %v140, 4294901760
    %v1941 = vsub.f32 %v140, %v1940
    %v1942 = vand.u32 %v1941, 4294901760
    %v1943 = vsub.f32 %v1941, %v1942
    %v1944 = vand.u32 %v1943, 4294901760
    %1945 = vmatprep.subr.mxu0 %v1944
    %v1946 = vand.u32 %v139, 4294901760
    %v1947 = vsub.f32 %v139, %v1946
    %v1948 = vand.u32 %v1947, 4294901760
    %v1949 = vsub.f32 %v1947, %v1948
    %v1950 = vand.u32 %v1949, 4294901760
    %1951 = vmatpush1.xpose.msra.mxu0 %v1950
    %v1952 = vand.u32 %v142, 4294901760
    %v1953 = vsub.f32 %v142, %v1952
    %v1954 = vand.u32 %v1953, 4294901760
    %v1955 = vsub.f32 %v1953, %v1954
    %v1956 = vand.u32 %v1955, 4294901760
    %1957 = vmatprep.subr.mxu0 %v1956
    %v1958 = vand.u32 %v141, 4294901760
    %v1959 = vsub.f32 %v141, %v1958
    %v1960 = vand.u32 %v1959, 4294901760
    %v1961 = vsub.f32 %v1959, %v1960
    %v1962 = vand.u32 %v1961, 4294901760
    %1963 = vmatpush1.xpose.msra.mxu0 %v1962
    %v1964 = vand.u32 %v144, 4294901760
    %v1965 = vsub.f32 %v144, %v1964
    %v1966 = vand.u32 %v1965, 4294901760
    %v1967 = vsub.f32 %v1965, %v1966
    %v1968 = vand.u32 %v1967, 4294901760
    %1969 = vmatprep.subr.mxu0 %v1968
    %v1970 = vand.u32 %v143, 4294901760
    %v1971 = vsub.f32 %v143, %v1970
    %v1972 = vand.u32 %v1971, 4294901760
    %v1973 = vsub.f32 %v1971, %v1972
    %v1974 = vand.u32 %v1973, 4294901760
    %1975 = vmatpush1.xpose.msra.mxu0 %v1974
    %v1976 = vand.u32 %v146, 4294901760
    %v1977 = vsub.f32 %v146, %v1976
    %v1978 = vand.u32 %v1977, 4294901760
    %v1979 = vsub.f32 %v1977, %v1978
    %v1980 = vand.u32 %v1979, 4294901760
    %1981 = vmatprep.subr.mxu0 %v1980
    %v1982 = vand.u32 %v145, 4294901760
    %v1983 = vsub.f32 %v145, %v1982
    %v1984 = vand.u32 %v1983, 4294901760
    %v1985 = vsub.f32 %v1983, %v1984
    %v1986 = vand.u32 %v1985, 4294901760
    %1987 = vmatpush1.xpose.msra.mxu0 %v1986
    %v1988 = vand.u32 %v148, 4294901760
    %v1989 = vsub.f32 %v148, %v1988
    %v1990 = vand.u32 %v1989, 4294901760
    %v1991 = vsub.f32 %v1989, %v1990
    %v1992 = vand.u32 %v1991, 4294901760
    %1993 = vmatprep.subr.mxu0 %v1992
    %v1994 = vand.u32 %v147, 4294901760
    %v1995 = vsub.f32 %v147, %v1994
    %v1996 = vand.u32 %v1995, 4294901760
    %v1997 = vsub.f32 %v1995, %v1996
    %v1998 = vand.u32 %v1997, 4294901760
    %1999 = vmatpush1.xpose.msra.mxu0 %v1998
    %v2000 = vand.u32 %v150, 4294901760
    %v2001 = vsub.f32 %v150, %v2000
    %v2002 = vand.u32 %v2001, 4294901760
    %v2003 = vsub.f32 %v2001, %v2002
    %v2004 = vand.u32 %v2003, 4294901760
    %2005 = vmatprep.subr.mxu0 %v2004
    %v2006 = vand.u32 %v149, 4294901760
    %v2007 = vsub.f32 %v149, %v2006
    %v2008 = vand.u32 %v2007, 4294901760
    %v2009 = vsub.f32 %v2007, %v2008
    %v2010 = vand.u32 %v2009, 4294901760
    %2011 = vmatpush1.xpose.msra.mxu0 %v2010
    %v2012 = vand.u32 %v152, 4294901760
    %v2013 = vsub.f32 %v152, %v2012
    %v2014 = vand.u32 %v2013, 4294901760
    %v2015 = vsub.f32 %v2013, %v2014
    %v2016 = vand.u32 %v2015, 4294901760
    %2017 = vmatprep.subr.mxu0 %v2016
    %v2018 = vand.u32 %v151, 4294901760
    %v2019 = vsub.f32 %v151, %v2018
    %v2020 = vand.u32 %v2019, 4294901760
    %v2021 = vsub.f32 %v2019, %v2020
    %v2022 = vand.u32 %v2021, 4294901760
    %2023 = vmatpush1.xpose.msra.mxu0 %v2022
    %v2024 = vand.u32 %v154, 4294901760
    %v2025 = vsub.f32 %v154, %v2024
    %v2026 = vand.u32 %v2025, 4294901760
    %v2027 = vsub.f32 %v2025, %v2026
    %v2028 = vand.u32 %v2027, 4294901760
    %2029 = vmatprep.subr.mxu0 %v2028
    %v2030 = vand.u32 %v153, 4294901760
    %v2031 = vsub.f32 %v153, %v2030
    %v2032 = vand.u32 %v2031, 4294901760
    %v2033 = vsub.f32 %v2031, %v2032
    %v2034 = vand.u32 %v2033, 4294901760
    %2035 = vmatpush1.xpose.msra.mxu0 %v2034
    %v2036 = vand.u32 %v156, 4294901760
    %v2037 = vsub.f32 %v156, %v2036
    %v2038 = vand.u32 %v2037, 4294901760
    %v2039 = vsub.f32 %v2037, %v2038
    %v2040 = vand.u32 %v2039, 4294901760
    %2041 = vmatprep.subr.mxu0 %v2040
    %v2042 = vand.u32 %v155, 4294901760
    %v2043 = vsub.f32 %v155, %v2042
    %v2044 = vand.u32 %v2043, 4294901760
    %v2045 = vsub.f32 %v2043, %v2044
    %v2046 = vand.u32 %v2045, 4294901760
    %2047 = vmatpush1.xpose.msra.mxu0 %v2046
    %v2048 = vand.u32 %v158, 4294901760
    %v2049 = vsub.f32 %v158, %v2048
    %v2050 = vand.u32 %v2049, 4294901760
    %v2051 = vsub.f32 %v2049, %v2050
    %v2052 = vand.u32 %v2051, 4294901760
    %2053 = vmatprep.subr.mxu0 %v2052
    %v2054 = vand.u32 %v157, 4294901760
    %v2055 = vsub.f32 %v157, %v2054
    %v2056 = vand.u32 %v2055, 4294901760
    %v2057 = vsub.f32 %v2055, %v2056
    %v2058 = vand.u32 %v2057, 4294901760
    %2059 = vmatpush1.xpose.msra.mxu0 %v2058
    %v2060 = vand.u32 %v160, 4294901760
    %v2061 = vsub.f32 %v160, %v2060
    %v2062 = vand.u32 %v2061, 4294901760
    %v2063 = vsub.f32 %v2061, %v2062
    %v2064 = vand.u32 %v2063, 4294901760
    %2065 = vmatprep.subr.mxu0 %v2064
    %v2066 = vand.u32 %v159, 4294901760
    %v2067 = vsub.f32 %v159, %v2066
    %v2068 = vand.u32 %v2067, 4294901760
    %v2069 = vsub.f32 %v2067, %v2068
    %v2070 = vand.u32 %v2069, 4294901760
    %2071 = vmatpush1.xpose.msra.mxu0 %v2070
    %v2072 = vand.u32 %v162, 4294901760
    %v2073 = vsub.f32 %v162, %v2072
    %v2074 = vand.u32 %v2073, 4294901760
    %v2075 = vsub.f32 %v2073, %v2074
    %v2076 = vand.u32 %v2075, 4294901760
    %2077 = vmatprep.subr.mxu0 %v2076
    %v2078 = vand.u32 %v161, 4294901760
    %v2079 = vsub.f32 %v161, %v2078
    %v2080 = vand.u32 %v2079, 4294901760
    %v2081 = vsub.f32 %v2079, %v2080
    %v2082 = vand.u32 %v2081, 4294901760
    %2083 = vmatpush1.xpose.msra.mxu0 %v2082
    %v2084 = vand.u32 %v164, 4294901760
    %v2085 = vsub.f32 %v164, %v2084
    %v2086 = vand.u32 %v2085, 4294901760
    %v2087 = vsub.f32 %v2085, %v2086
    %v2088 = vand.u32 %v2087, 4294901760
    %2089 = vmatprep.subr.mxu0 %v2088
    %v2090 = vand.u32 %v163, 4294901760
    %v2091 = vsub.f32 %v163, %v2090
    %v2092 = vand.u32 %v2091, 4294901760
    %v2093 = vsub.f32 %v2091, %v2092
    %v2094 = vand.u32 %v2093, 4294901760
    %2095 = vmatpush1.xpose.msra.mxu0 %v2094
    %v2096 = vand.u32 %v166, 4294901760
    %v2097 = vsub.f32 %v166, %v2096
    %v2098 = vand.u32 %v2097, 4294901760
    %v2099 = vsub.f32 %v2097, %v2098
    %v2100 = vand.u32 %v2099, 4294901760
    %2101 = vmatprep.subr.mxu0 %v2100
    %v2102 = vand.u32 %v165, 4294901760
    %v2103 = vsub.f32 %v165, %v2102
    %v2104 = vand.u32 %v2103, 4294901760
    %v2105 = vsub.f32 %v2103, %v2104
    %v2106 = vand.u32 %v2105, 4294901760
    %2107 = vmatpush1.xpose.msra.mxu0 %v2106
    %v2108 = vand.u32 %v168, 4294901760
    %v2109 = vsub.f32 %v168, %v2108
    %v2110 = vand.u32 %v2109, 4294901760
    %v2111 = vsub.f32 %v2109, %v2110
    %v2112 = vand.u32 %v2111, 4294901760
    %2113 = vmatprep.subr.mxu0 %v2112
    %v2114 = vand.u32 %v167, 4294901760
    %v2115 = vsub.f32 %v167, %v2114
    %v2116 = vand.u32 %v2115, 4294901760
    %v2117 = vsub.f32 %v2115, %v2116
    %v2118 = vand.u32 %v2117, 4294901760
    %2119 = vmatpush1.xpose.msra.mxu0 %v2118
    %v2120 = vand.u32 %v170, 4294901760
    %v2121 = vsub.f32 %v170, %v2120
    %v2122 = vand.u32 %v2121, 4294901760
    %v2123 = vsub.f32 %v2121, %v2122
    %v2124 = vand.u32 %v2123, 4294901760
    %2125 = vmatprep.subr.mxu0 %v2124
    %v2126 = vand.u32 %v169, 4294901760
    %v2127 = vsub.f32 %v169, %v2126
    %v2128 = vand.u32 %v2127, 4294901760
    %v2129 = vsub.f32 %v2127, %v2128
    %v2130 = vand.u32 %v2129, 4294901760
    %2131 = vmatpush1.xpose.msra.mxu0 %v2130
    %v2132 = vand.u32 %v172, 4294901760
    %v2133 = vsub.f32 %v172, %v2132
    %v2134 = vand.u32 %v2133, 4294901760
    %v2135 = vsub.f32 %v2133, %v2134
    %v2136 = vand.u32 %v2135, 4294901760
    %2137 = vmatprep.subr.mxu0 %v2136
    %v2138 = vand.u32 %v171, 4294901760
    %v2139 = vsub.f32 %v171, %v2138
    %v2140 = vand.u32 %v2139, 4294901760
    %v2141 = vsub.f32 %v2139, %v2140
    %v2142 = vand.u32 %v2141, 4294901760
    %2143 = vmatpush1.xpose.msra.mxu0 %v2142
    %v2144 = vand.u32 %v174, 4294901760
    %v2145 = vsub.f32 %v174, %v2144
    %v2146 = vand.u32 %v2145, 4294901760
    %v2147 = vsub.f32 %v2145, %v2146
    %v2148 = vand.u32 %v2147, 4294901760
    %2149 = vmatprep.subr.mxu0 %v2148
    %v2150 = vand.u32 %v173, 4294901760
    %v2151 = vsub.f32 %v173, %v2150
    %v2152 = vand.u32 %v2151, 4294901760
    %v2153 = vsub.f32 %v2151, %v2152
    %v2154 = vand.u32 %v2153, 4294901760
    %2155 = vmatpush1.xpose.msra.mxu0 %v2154
    %v2156 = vand.u32 %v176, 4294901760
    %v2157 = vsub.f32 %v176, %v2156
    %v2158 = vand.u32 %v2157, 4294901760
    %v2159 = vsub.f32 %v2157, %v2158
    %v2160 = vand.u32 %v2159, 4294901760
    %2161 = vmatprep.subr.mxu0 %v2160
    %v2162 = vand.u32 %v175, 4294901760
    %v2163 = vsub.f32 %v175, %v2162
    %v2164 = vand.u32 %v2163, 4294901760
    %v2165 = vsub.f32 %v2163, %v2164
    %v2166 = vand.u32 %v2165, 4294901760
    %2167 = vmatpush1.xpose.msra.mxu0 %v2166
    %v2168 = vand.u32 %v44, 4294901760
    %2169 = vmatprep.mubr.f32.mxu0 %v2168
    %v2170 = vand.u32 %v43, 4294901760
    %2171 = vmatmul.mubr.f32.gmra.mrb[0].mxu0 %v2170
    %v2172 = vpop.f32.mrb[0].mxu0
    %v2173 = vadd.f32 %v1748, %v2172
    %v2174 = vpop.f32.mrb[0].mxu0
    %v2175 = vadd.f32 %v1750, %v2174
    %v2176 = vand.u32 %v46, 4294901760
    %2177 = vmatprep.mubr.f32.mxu0 %v2176
    %v2178 = vand.u32 %v45, 4294901760
    %2179 = vmatmul.mubr.f32.gmra.mrb[0].mxu0 %v2178
    %v2180 = vpop.f32.mrb[0].mxu0
    %v2181 = vadd.f32 %v1764, %v2180
    %v2182 = vpop.f32.mrb[0].mxu0
    %v2183 = vadd.f32 %v1766, %v2182
    %v2184 = vand.u32 %v48, 4294901760
    %2185 = vmatprep.mubr.f32.mxu0 %v2184
    %v2186 = vand.u32 %v47, 4294901760
    %2187 = vmatmul.mubr.f32.gmra.mrb[0].mxu0 %v2186
    %v2188 = vpop.f32.mrb[0].mxu0
    %v2189 = vadd.f32 %v1780, %v2188
    %v2190 = vpop.f32.mrb[0].mxu0
    %v2191 = vadd.f32 %v1782, %v2190
    %2192 = vdwg.mxu0
    %v2193 = vand.u32 %v114, 4294901760
    %v2194 = vsub.f32 %v114, %v2193
    %2195 = vmatprep.subr.mxu0 %v2194
    %v2196 = vand.u32 %v113, 4294901760
    %v2197 = vsub.f32 %v113, %v2196
    %2198 = vmatpush1.xpose.msra.mxu0 %v2197
    %v2199 = vand.u32 %v116, 4294901760
    %v2200 = vsub.f32 %v116, %v2199
    %2201 = vmatprep.subr.mxu0 %v2200
    %v2202 = vand.u32 %v115, 4294901760
    %v2203 = vsub.f32 %v115, %v2202
    %2204 = vmatpush1.xpose.msra.mxu0 %v2203
    %v2205 = vand.u32 %v118, 4294901760
    %v2206 = vsub.f32 %v118, %v2205
    %2207 = vmatprep.subr.mxu0 %v2206
    %v2208 = vand.u32 %v117, 4294901760
    %v2209 = vsub.f32 %v117, %v2208
    %2210 = vmatpush1.xpose.msra.mxu0 %v2209
    %v2211 = vand.u32 %v120, 4294901760
    %v2212 = vsub.f32 %v120, %v2211
    %2213 = vmatprep.subr.mxu0 %v2212
    %v2214 = vand.u32 %v119, 4294901760
    %v2215 = vsub.f32 %v119, %v2214
    %2216 = vmatpush1.xpose.msra.mxu0 %v2215
    %v2217 = vand.u32 %v122, 4294901760
    %v2218 = vsub.f32 %v122, %v2217
    %2219 = vmatprep.subr.mxu0 %v2218
    %v2220 = vand.u32 %v121, 4294901760
    %v2221 = vsub.f32 %v121, %v2220
    %2222 = vmatpush1.xpose.msra.mxu0 %v2221
    %v2223 = vand.u32 %v124, 4294901760
    %v2224 = vsub.f32 %v124, %v2223
    %2225 = vmatprep.subr.mxu0 %v2224
    %v2226 = vand.u32 %v123, 4294901760
    %v2227 = vsub.f32 %v123, %v2226
    %2228 = vmatpush1.xpose.msra.mxu0 %v2227
    %v2229 = vand.u32 %v126, 4294901760
    %v2230 = vsub.f32 %v126, %v2229
    %2231 = vmatprep.subr.mxu0 %v2230
    %v2232 = vand.u32 %v125, 4294901760
    %v2233 = vsub.f32 %v125, %v2232
    %2234 = vmatpush1.xpose.msra.mxu0 %v2233
    %v2235 = vand.u32 %v128, 4294901760
    %v2236 = vsub.f32 %v128, %v2235
    %2237 = vmatprep.subr.mxu0 %v2236
    %v2238 = vand.u32 %v127, 4294901760
    %v2239 = vsub.f32 %v127, %v2238
    %2240 = vmatpush1.xpose.msra.mxu0 %v2239
    %v2241 = vand.u32 %v130, 4294901760
    %v2242 = vsub.f32 %v130, %v2241
    %2243 = vmatprep.subr.mxu0 %v2242
    %v2244 = vand.u32 %v129, 4294901760
    %v2245 = vsub.f32 %v129, %v2244
    %2246 = vmatpush1.xpose.msra.mxu0 %v2245
    %v2247 = vand.u32 %v132, 4294901760
    %v2248 = vsub.f32 %v132, %v2247
    %2249 = vmatprep.subr.mxu0 %v2248
    %v2250 = vand.u32 %v131, 4294901760
    %v2251 = vsub.f32 %v131, %v2250
    %2252 = vmatpush1.xpose.msra.mxu0 %v2251
    %v2253 = vand.u32 %v134, 4294901760
    %v2254 = vsub.f32 %v134, %v2253
    %2255 = vmatprep.subr.mxu0 %v2254
    %v2256 = vand.u32 %v133, 4294901760
    %v2257 = vsub.f32 %v133, %v2256
    %2258 = vmatpush1.xpose.msra.mxu0 %v2257
    %v2259 = vand.u32 %v136, 4294901760
    %v2260 = vsub.f32 %v136, %v2259
    %2261 = vmatprep.subr.mxu0 %v2260
    %v2262 = vand.u32 %v135, 4294901760
    %v2263 = vsub.f32 %v135, %v2262
    %2264 = vmatpush1.xpose.msra.mxu0 %v2263
    %v2265 = vand.u32 %v138, 4294901760
    %v2266 = vsub.f32 %v138, %v2265
    %2267 = vmatprep.subr.mxu0 %v2266
    %v2268 = vand.u32 %v137, 4294901760
    %v2269 = vsub.f32 %v137, %v2268
    %2270 = vmatpush1.xpose.msra.mxu0 %v2269
    %v2271 = vand.u32 %v140, 4294901760
    %v2272 = vsub.f32 %v140, %v2271
    %2273 = vmatprep.subr.mxu0 %v2272
    %v2274 = vand.u32 %v139, 4294901760
    %v2275 = vsub.f32 %v139, %v2274
    %2276 = vmatpush1.xpose.msra.mxu0 %v2275
    %v2277 = vand.u32 %v142, 4294901760
    %v2278 = vsub.f32 %v142, %v2277
    %2279 = vmatprep.subr.mxu0 %v2278
    %v2280 = vand.u32 %v141, 4294901760
    %v2281 = vsub.f32 %v141, %v2280
    %2282 = vmatpush1.xpose.msra.mxu0 %v2281
    %v2283 = vand.u32 %v144, 4294901760
    %v2284 = vsub.f32 %v144, %v2283
    %2285 = vmatprep.subr.mxu0 %v2284
    %v2286 = vand.u32 %v143, 4294901760
    %v2287 = vsub.f32 %v143, %v2286
    %2288 = vmatpush1.xpose.msra.mxu0 %v2287
    %v2289 = vand.u32 %v146, 4294901760
    %v2290 = vsub.f32 %v146, %v2289
    %2291 = vmatprep.subr.mxu0 %v2290
    %v2292 = vand.u32 %v145, 4294901760
    %v2293 = vsub.f32 %v145, %v2292
    %2294 = vmatpush1.xpose.msra.mxu0 %v2293
    %v2295 = vand.u32 %v148, 4294901760
    %v2296 = vsub.f32 %v148, %v2295
    %2297 = vmatprep.subr.mxu0 %v2296
    %v2298 = vand.u32 %v147, 4294901760
    %v2299 = vsub.f32 %v147, %v2298
    %2300 = vmatpush1.xpose.msra.mxu0 %v2299
    %v2301 = vand.u32 %v150, 4294901760
    %v2302 = vsub.f32 %v150, %v2301
    %2303 = vmatprep.subr.mxu0 %v2302
    %v2304 = vand.u32 %v149, 4294901760
    %v2305 = vsub.f32 %v149, %v2304
    %2306 = vmatpush1.xpose.msra.mxu0 %v2305
    %v2307 = vand.u32 %v152, 4294901760
    %v2308 = vsub.f32 %v152, %v2307
    %2309 = vmatprep.subr.mxu0 %v2308
    %v2310 = vand.u32 %v151, 4294901760
    %v2311 = vsub.f32 %v151, %v2310
    %2312 = vmatpush1.xpose.msra.mxu0 %v2311
    %v2313 = vand.u32 %v154, 4294901760
    %v2314 = vsub.f32 %v154, %v2313
    %2315 = vmatprep.subr.mxu0 %v2314
    %v2316 = vand.u32 %v153, 4294901760
    %v2317 = vsub.f32 %v153, %v2316
    %2318 = vmatpush1.xpose.msra.mxu0 %v2317
    %v2319 = vand.u32 %v156, 4294901760
    %v2320 = vsub.f32 %v156, %v2319
    %2321 = vmatprep.subr.mxu0 %v2320
    %v2322 = vand.u32 %v155, 4294901760
    %v2323 = vsub.f32 %v155, %v2322
    %2324 = vmatpush1.xpose.msra.mxu0 %v2323
    %v2325 = vand.u32 %v158, 4294901760
    %v2326 = vsub.f32 %v158, %v2325
    %2327 = vmatprep.subr.mxu0 %v2326
    %v2328 = vand.u32 %v157, 4294901760
    %v2329 = vsub.f32 %v157, %v2328
    %2330 = vmatpush1.xpose.msra.mxu0 %v2329
    %v2331 = vand.u32 %v160, 4294901760
    %v2332 = vsub.f32 %v160, %v2331
    %2333 = vmatprep.subr.mxu0 %v2332
    %v2334 = vand.u32 %v159, 4294901760
    %v2335 = vsub.f32 %v159, %v2334
    %2336 = vmatpush1.xpose.msra.mxu0 %v2335
    %v2337 = vand.u32 %v162, 4294901760
    %v2338 = vsub.f32 %v162, %v2337
    %2339 = vmatprep.subr.mxu0 %v2338
    %v2340 = vand.u32 %v161, 4294901760
    %v2341 = vsub.f32 %v161, %v2340
    %2342 = vmatpush1.xpose.msra.mxu0 %v2341
    %v2343 = vand.u32 %v164, 4294901760
    %v2344 = vsub.f32 %v164, %v2343
    %2345 = vmatprep.subr.mxu0 %v2344
    %v2346 = vand.u32 %v163, 4294901760
    %v2347 = vsub.f32 %v163, %v2346
    %2348 = vmatpush1.xpose.msra.mxu0 %v2347
    %v2349 = vand.u32 %v166, 4294901760
    %v2350 = vsub.f32 %v166, %v2349
    %2351 = vmatprep.subr.mxu0 %v2350
    %v2352 = vand.u32 %v165, 4294901760
    %v2353 = vsub.f32 %v165, %v2352
    %2354 = vmatpush1.xpose.msra.mxu0 %v2353
    %v2355 = vand.u32 %v168, 4294901760
    %v2356 = vsub.f32 %v168, %v2355
    %2357 = vmatprep.subr.mxu0 %v2356
    %v2358 = vand.u32 %v167, 4294901760
    %v2359 = vsub.f32 %v167, %v2358
    %2360 = vmatpush1.xpose.msra.mxu0 %v2359
    %v2361 = vand.u32 %v170, 4294901760
    %v2362 = vsub.f32 %v170, %v2361
    %2363 = vmatprep.subr.mxu0 %v2362
    %v2364 = vand.u32 %v169, 4294901760
    %v2365 = vsub.f32 %v169, %v2364
    %2366 = vmatpush1.xpose.msra.mxu0 %v2365
    %v2367 = vand.u32 %v172, 4294901760
    %v2368 = vsub.f32 %v172, %v2367
    %2369 = vmatprep.subr.mxu0 %v2368
    %v2370 = vand.u32 %v171, 4294901760
    %v2371 = vsub.f32 %v171, %v2370
    %2372 = vmatpush1.xpose.msra.mxu0 %v2371
    %v2373 = vand.u32 %v174, 4294901760
    %v2374 = vsub.f32 %v174, %v2373
    %2375 = vmatprep.subr.mxu0 %v2374
    %v2376 = vand.u32 %v173, 4294901760
    %v2377 = vsub.f32 %v173, %v2376
    %2378 = vmatpush1.xpose.msra.mxu0 %v2377
    %v2379 = vand.u32 %v176, 4294901760
    %v2380 = vsub.f32 %v176, %v2379
    %2381 = vmatprep.subr.mxu0 %v2380
    %v2382 = vand.u32 %v175, 4294901760
    %v2383 = vsub.f32 %v175, %v2382
    %2384 = vmatpush1.xpose.msra.mxu0 %v2383
    %v2385 = vand.u32 %v44, 4294901760
    %v2386 = vsub.f32 %v44, %v2385
    %2387 = vmatprep.mubr.f32.mxu0 %v2386
    %v2388 = vand.u32 %v43, 4294901760
    %v2389 = vsub.f32 %v43, %v2388
    %2390 = vmatmul.mubr.f32.gmra.mrb[0].mxu0 %v2389
    %v2391 = vpop.f32.mrb[0].mxu0
    %v2392 = vadd.f32 %v2173, %v2391
    %v2393 = vpop.f32.mrb[0].mxu0
    %v2394 = vadd.f32 %v2175, %v2393
    %v2395 = vand.u32 %v46, 4294901760
    %v2396 = vsub.f32 %v46, %v2395
    %2397 = vmatprep.mubr.f32.mxu0 %v2396
    %v2398 = vand.u32 %v45, 4294901760
    %v2399 = vsub.f32 %v45, %v2398
    %2400 = vmatmul.mubr.f32.gmra.mrb[0].mxu0 %v2399
    %v2401 = vpop.f32.mrb[0].mxu0
    %v2402 = vadd.f32 %v2181, %v2401
    %v2403 = vpop.f32.mrb[0].mxu0
    %v2404 = vadd.f32 %v2183, %v2403
    %v2405 = vand.u32 %v48, 4294901760
    %v2406 = vsub.f32 %v48, %v2405
    %2407 = vmatprep.mubr.f32.mxu0 %v2406
    %v2408 = vand.u32 %v47, 4294901760
    %v2409 = vsub.f32 %v47, %v2408
    %2410 = vmatmul.mubr.f32.gmra.mrb[0].mxu0 %v2409
    %v2411 = vpop.f32.mrb[0].mxu0
    %v2412 = vadd.f32 %v2189, %v2411
    %v2413 = vpop.f32.mrb[0].mxu0
    %v2414 = vadd.f32 %v2191, %v2413
    %2415 = vdwg.mxu0
    %v2416 = vand.u32 %v114, 4294901760
    %2417 = vmatprep.subr.mxu0 %v2416
    %v2418 = vand.u32 %v113, 4294901760
    %2419 = vmatpush1.xpose.msra.mxu0 %v2418
    %v2420 = vand.u32 %v116, 4294901760
    %2421 = vmatprep.subr.mxu0 %v2420
    %v2422 = vand.u32 %v115, 4294901760
    %2423 = vmatpush1.xpose.msra.mxu0 %v2422
    %v2424 = vand.u32 %v118, 4294901760
    %2425 = vmatprep.subr.mxu0 %v2424
    %v2426 = vand.u32 %v117, 4294901760
    %2427 = vmatpush1.xpose.msra.mxu0 %v2426
    %v2428 = vand.u32 %v120, 4294901760
    %2429 = vmatprep.subr.mxu0 %v2428
    %v2430 = vand.u32 %v119, 4294901760
    %2431 = vmatpush1.xpose.msra.mxu0 %v2430
    %v2432 = vand.u32 %v122, 4294901760
    %2433 = vmatprep.subr.mxu0 %v2432
    %v2434 = vand.u32 %v121, 4294901760
    %2435 = vmatpush1.xpose.msra.mxu0 %v2434
    %v2436 = vand.u32 %v124, 4294901760
    %2437 = vmatprep.subr.mxu0 %v2436
    %v2438 = vand.u32 %v123, 4294901760
    %2439 = vmatpush1.xpose.msra.mxu0 %v2438
    %v2440 = vand.u32 %v126, 4294901760
    %2441 = vmatprep.subr.mxu0 %v2440
    %v2442 = vand.u32 %v125, 4294901760
    %2443 = vmatpush1.xpose.msra.mxu0 %v2442
    %v2444 = vand.u32 %v128, 4294901760
    %2445 = vmatprep.subr.mxu0 %v2444
    %v2446 = vand.u32 %v127, 4294901760
    %2447 = vmatpush1.xpose.msra.mxu0 %v2446
    %v2448 = vand.u32 %v130, 4294901760
    %2449 = vmatprep.subr.mxu0 %v2448
    %v2450 = vand.u32 %v129, 4294901760
    %2451 = vmatpush1.xpose.msra.mxu0 %v2450
    %v2452 = vand.u32 %v132, 4294901760
    %2453 = vmatprep.subr.mxu0 %v2452
    %v2454 = vand.u32 %v131, 4294901760
    %2455 = vmatpush1.xpose.msra.mxu0 %v2454
    %v2456 = vand.u32 %v134, 4294901760
    %2457 = vmatprep.subr.mxu0 %v2456
    %v2458 = vand.u32 %v133, 4294901760
    %2459 = vmatpush1.xpose.msra.mxu0 %v2458
    %v2460 = vand.u32 %v136, 4294901760
    %2461 = vmatprep.subr.mxu0 %v2460
    %v2462 = vand.u32 %v135, 4294901760
    %2463 = vmatpush1.xpose.msra.mxu0 %v2462
    %v2464 = vand.u32 %v138, 4294901760
    %2465 = vmatprep.subr.mxu0 %v2464
    %v2466 = vand.u32 %v137, 4294901760
    %2467 = vmatpush1.xpose.msra.mxu0 %v2466
    %v2468 = vand.u32 %v140, 4294901760
    %2469 = vmatprep.subr.mxu0 %v2468
    %v2470 = vand.u32 %v139, 4294901760
    %2471 = vmatpush1.xpose.msra.mxu0 %v2470
    %v2472 = vand.u32 %v142, 4294901760
    %2473 = vmatprep.subr.mxu0 %v2472
    %v2474 = vand.u32 %v141, 4294901760
    %2475 = vmatpush1.xpose.msra.mxu0 %v2474
    %v2476 = vand.u32 %v144, 4294901760
    %2477 = vmatprep.subr.mxu0 %v2476
    %v2478 = vand.u32 %v143, 4294901760
    %2479 = vmatpush1.xpose.msra.mxu0 %v2478
    %v2480 = vand.u32 %v146, 4294901760
    %2481 = vmatprep.subr.mxu0 %v2480
    %v2482 = vand.u32 %v145, 4294901760
    %2483 = vmatpush1.xpose.msra.mxu0 %v2482
    %v2484 = vand.u32 %v148, 4294901760
    %2485 = vmatprep.subr.mxu0 %v2484
    %v2486 = vand.u32 %v147, 4294901760
    %2487 = vmatpush1.xpose.msra.mxu0 %v2486
    %v2488 = vand.u32 %v150, 4294901760
    %2489 = vmatprep.subr.mxu0 %v2488
    %v2490 = vand.u32 %v149, 4294901760
    %2491 = vmatpush1.xpose.msra.mxu0 %v2490
    %v2492 = vand.u32 %v152, 4294901760
    %2493 = vmatprep.subr.mxu0 %v2492
    %v2494 = vand.u32 %v151, 4294901760
    %2495 = vmatpush1.xpose.msra.mxu0 %v2494
    %v2496 = vand.u32 %v154, 4294901760
    %2497 = vmatprep.subr.mxu0 %v2496
    %v2498 = vand.u32 %v153, 4294901760
    %2499 = vmatpush1.xpose.msra.mxu0 %v2498
    %v2500 = vand.u32 %v156, 4294901760
    %2501 = vmatprep.subr.mxu0 %v2500
    %v2502 = vand.u32 %v155, 4294901760
    %2503 = vmatpush1.xpose.msra.mxu0 %v2502
    %v2504 = vand.u32 %v158, 4294901760
    %2505 = vmatprep.subr.mxu0 %v2504
    %v2506 = vand.u32 %v157, 4294901760
    %2507 = vmatpush1.xpose.msra.mxu0 %v2506
    %v2508 = vand.u32 %v160, 4294901760
    %2509 = vmatprep.subr.mxu0 %v2508
    %v2510 = vand.u32 %v159, 4294901760
    %2511 = vmatpush1.xpose.msra.mxu0 %v2510
    %v2512 = vand.u32 %v162, 4294901760
    %2513 = vmatprep.subr.mxu0 %v2512
    %v2514 = vand.u32 %v161, 4294901760
    %2515 = vmatpush1.xpose.msra.mxu0 %v2514
    %v2516 = vand.u32 %v164, 4294901760
    %2517 = vmatprep.subr.mxu0 %v2516
    %v2518 = vand.u32 %v163, 4294901760
    %2519 = vmatpush1.xpose.msra.mxu0 %v2518
    %v2520 = vand.u32 %v166, 4294901760
    %2521 = vmatprep.subr.mxu0 %v2520
    %v2522 = vand.u32 %v165, 4294901760
    %2523 = vmatpush1.xpose.msra.mxu0 %v2522
    %v2524 = vand.u32 %v168, 4294901760
    %2525 = vmatprep.subr.mxu0 %v2524
    %v2526 = vand.u32 %v167, 4294901760
    %2527 = vmatpush1.xpose.msra.mxu0 %v2526
    %v2528 = vand.u32 %v170, 4294901760
    %2529 = vmatprep.subr.mxu0 %v2528
    %v2530 = vand.u32 %v169, 4294901760
    %2531 = vmatpush1.xpose.msra.mxu0 %v2530
    %v2532 = vand.u32 %v172, 4294901760
    %2533 = vmatprep.subr.mxu0 %v2532
    %v2534 = vand.u32 %v171, 4294901760
    %2535 = vmatpush1.xpose.msra.mxu0 %v2534
    %v2536 = vand.u32 %v174, 4294901760
    %2537 = vmatprep.subr.mxu0 %v2536
    %v2538 = vand.u32 %v173, 4294901760
    %2539 = vmatpush1.xpose.msra.mxu0 %v2538
    %v2540 = vand.u32 %v176, 4294901760
    %2541 = vmatprep.subr.mxu0 %v2540
    %v2542 = vand.u32 %v175, 4294901760
    %2543 = vmatpush1.xpose.msra.mxu0 %v2542
    %v2544 = vand.u32 %v44, 4294901760
    %v2545 = vsub.f32 %v44, %v2544
    %v2546 = vand.u32 %v2545, 4294901760
    %2547 = vmatprep.mubr.f32.mxu0 %v2546
    %v2548 = vand.u32 %v43, 4294901760
    %v2549 = vsub.f32 %v43, %v2548
    %v2550 = vand.u32 %v2549, 4294901760
    %2551 = vmatmul.mubr.f32.gmra.mrb[0].mxu0 %v2550
    %v2552 = vpop.f32.mrb[0].mxu0
    %v2553 = vadd.f32 %v2392, %v2552
    %v2554 = vpop.f32.mrb[0].mxu0
    %v2555 = vadd.f32 %v2394, %v2554
    %v2556 = vand.u32 %v46, 4294901760
    %v2557 = vsub.f32 %v46, %v2556
    %v2558 = vand.u32 %v2557, 4294901760
    %2559 = vmatprep.mubr.f32.mxu0 %v2558
    %v2560 = vand.u32 %v45, 4294901760
    %v2561 = vsub.f32 %v45, %v2560
    %v2562 = vand.u32 %v2561, 4294901760
    %2563 = vmatmul.mubr.f32.gmra.mrb[0].mxu0 %v2562
    %v2564 = vpop.f32.mrb[0].mxu0
    %v2565 = vadd.f32 %v2402, %v2564
    %v2566 = vpop.f32.mrb[0].mxu0
    %v2567 = vadd.f32 %v2404, %v2566
    %v2568 = vand.u32 %v48, 4294901760
    %v2569 = vsub.f32 %v48, %v2568
    %v2570 = vand.u32 %v2569, 4294901760
    %2571 = vmatprep.mubr.f32.mxu0 %v2570
    %v2572 = vand.u32 %v47, 4294901760
    %v2573 = vsub.f32 %v47, %v2572
    %v2574 = vand.u32 %v2573, 4294901760
    %2575 = vmatmul.mubr.f32.gmra.mrb[0].mxu0 %v2574
    %v2576 = vpop.f32.mrb[0].mxu0
    %v2577 = vadd.f32 %v2412, %v2576
    %v2578 = vpop.f32.mrb[0].mxu0
    %v2579 = vadd.f32 %v2414, %v2578
    %2580 = vdwg.mxu0
    %v2581 = vand.u32 %v114, 4294901760
    %v2582 = vsub.f32 %v114, %v2581
    %v2583 = vand.u32 %v2582, 4294901760
    %2584 = vmatprep.subr.mxu0 %v2583
    %v2585 = vand.u32 %v113, 4294901760
    %v2586 = vsub.f32 %v113, %v2585
    %v2587 = vand.u32 %v2586, 4294901760
    %2588 = vmatpush1.xpose.msra.mxu0 %v2587
    %v2589 = vand.u32 %v116, 4294901760
    %v2590 = vsub.f32 %v116, %v2589
    %v2591 = vand.u32 %v2590, 4294901760
    %2592 = vmatprep.subr.mxu0 %v2591
    %v2593 = vand.u32 %v115, 4294901760
    %v2594 = vsub.f32 %v115, %v2593
    %v2595 = vand.u32 %v2594, 4294901760
    %2596 = vmatpush1.xpose.msra.mxu0 %v2595
    %v2597 = vand.u32 %v118, 4294901760
    %v2598 = vsub.f32 %v118, %v2597
    %v2599 = vand.u32 %v2598, 4294901760
    %2600 = vmatprep.subr.mxu0 %v2599
    %v2601 = vand.u32 %v117, 4294901760
    %v2602 = vsub.f32 %v117, %v2601
    %v2603 = vand.u32 %v2602, 4294901760
    %2604 = vmatpush1.xpose.msra.mxu0 %v2603
    %v2605 = vand.u32 %v120, 4294901760
    %v2606 = vsub.f32 %v120, %v2605
    %v2607 = vand.u32 %v2606, 4294901760
    %2608 = vmatprep.subr.mxu0 %v2607
    %v2609 = vand.u32 %v119, 4294901760
    %v2610 = vsub.f32 %v119, %v2609
    %v2611 = vand.u32 %v2610, 4294901760
    %2612 = vmatpush1.xpose.msra.mxu0 %v2611
    %v2613 = vand.u32 %v122, 4294901760
    %v2614 = vsub.f32 %v122, %v2613
    %v2615 = vand.u32 %v2614, 4294901760
    %2616 = vmatprep.subr.mxu0 %v2615
    %v2617 = vand.u32 %v121, 4294901760
    %v2618 = vsub.f32 %v121, %v2617
    %v2619 = vand.u32 %v2618, 4294901760
    %2620 = vmatpush1.xpose.msra.mxu0 %v2619
    %v2621 = vand.u32 %v124, 4294901760
    %v2622 = vsub.f32 %v124, %v2621
    %v2623 = vand.u32 %v2622, 4294901760
    %2624 = vmatprep.subr.mxu0 %v2623
    %v2625 = vand.u32 %v123, 4294901760
    %v2626 = vsub.f32 %v123, %v2625
    %v2627 = vand.u32 %v2626, 4294901760
    %2628 = vmatpush1.xpose.msra.mxu0 %v2627
    %v2629 = vand.u32 %v126, 4294901760
    %v2630 = vsub.f32 %v126, %v2629
    %v2631 = vand.u32 %v2630, 4294901760
    %2632 = vmatprep.subr.mxu0 %v2631
    %v2633 = vand.u32 %v125, 4294901760
    %v2634 = vsub.f32 %v125, %v2633
    %v2635 = vand.u32 %v2634, 4294901760
    %2636 = vmatpush1.xpose.msra.mxu0 %v2635
    %v2637 = vand.u32 %v128, 4294901760
    %v2638 = vsub.f32 %v128, %v2637
    %v2639 = vand.u32 %v2638, 4294901760
    %2640 = vmatprep.subr.mxu0 %v2639
    %v2641 = vand.u32 %v127, 4294901760
    %v2642 = vsub.f32 %v127, %v2641
    %v2643 = vand.u32 %v2642, 4294901760
    %2644 = vmatpush1.xpose.msra.mxu0 %v2643
    %v2645 = vand.u32 %v130, 4294901760
    %v2646 = vsub.f32 %v130, %v2645
    %v2647 = vand.u32 %v2646, 4294901760
    %2648 = vmatprep.subr.mxu0 %v2647
    %v2649 = vand.u32 %v129, 4294901760
    %v2650 = vsub.f32 %v129, %v2649
    %v2651 = vand.u32 %v2650, 4294901760
    %2652 = vmatpush1.xpose.msra.mxu0 %v2651
    %v2653 = vand.u32 %v132, 4294901760
    %v2654 = vsub.f32 %v132, %v2653
    %v2655 = vand.u32 %v2654, 4294901760
    %2656 = vmatprep.subr.mxu0 %v2655
    %v2657 = vand.u32 %v131, 4294901760
    %v2658 = vsub.f32 %v131, %v2657
    %v2659 = vand.u32 %v2658, 4294901760
    %2660 = vmatpush1.xpose.msra.mxu0 %v2659
    %v2661 = vand.u32 %v134, 4294901760
    %v2662 = vsub.f32 %v134, %v2661
    %v2663 = vand.u32 %v2662, 4294901760
    %2664 = vmatprep.subr.mxu0 %v2663
    %v2665 = vand.u32 %v133, 4294901760
    %v2666 = vsub.f32 %v133, %v2665
    %v2667 = vand.u32 %v2666, 4294901760
    %2668 = vmatpush1.xpose.msra.mxu0 %v2667
    %v2669 = vand.u32 %v136, 4294901760
    %v2670 = vsub.f32 %v136, %v2669
    %v2671 = vand.u32 %v2670, 4294901760
    %2672 = vmatprep.subr.mxu0 %v2671
    %v2673 = vand.u32 %v135, 4294901760
    %v2674 = vsub.f32 %v135, %v2673
    %v2675 = vand.u32 %v2674, 4294901760
    %2676 = vmatpush1.xpose.msra.mxu0 %v2675
    %v2677 = vand.u32 %v138, 4294901760
    %v2678 = vsub.f32 %v138, %v2677
    %v2679 = vand.u32 %v2678, 4294901760
    %2680 = vmatprep.subr.mxu0 %v2679
    %v2681 = vand.u32 %v137, 4294901760
    %v2682 = vsub.f32 %v137, %v2681
    %v2683 = vand.u32 %v2682, 4294901760
    %2684 = vmatpush1.xpose.msra.mxu0 %v2683
    %v2685 = vand.u32 %v140, 4294901760
    %v2686 = vsub.f32 %v140, %v2685
    %v2687 = vand.u32 %v2686, 4294901760
    %2688 = vmatprep.subr.mxu0 %v2687
    %v2689 = vand.u32 %v139, 4294901760
    %v2690 = vsub.f32 %v139, %v2689
    %v2691 = vand.u32 %v2690, 4294901760
    %2692 = vmatpush1.xpose.msra.mxu0 %v2691
    %v2693 = vand.u32 %v142, 4294901760
    %v2694 = vsub.f32 %v142, %v2693
    %v2695 = vand.u32 %v2694, 4294901760
    %2696 = vmatprep.subr.mxu0 %v2695
    %v2697 = vand.u32 %v141, 4294901760
    %v2698 = vsub.f32 %v141, %v2697
    %v2699 = vand.u32 %v2698, 4294901760
    %2700 = vmatpush1.xpose.msra.mxu0 %v2699
    %v2701 = vand.u32 %v144, 4294901760
    %v2702 = vsub.f32 %v144, %v2701
    %v2703 = vand.u32 %v2702, 4294901760
    %2704 = vmatprep.subr.mxu0 %v2703
    %v2705 = vand.u32 %v143, 4294901760
    %v2706 = vsub.f32 %v143, %v2705
    %v2707 = vand.u32 %v2706, 4294901760
    %2708 = vmatpush1.xpose.msra.mxu0 %v2707
    %v2709 = vand.u32 %v146, 4294901760
    %v2710 = vsub.f32 %v146, %v2709
    %v2711 = vand.u32 %v2710, 4294901760
    %2712 = vmatprep.subr.mxu0 %v2711
    %v2713 = vand.u32 %v145, 4294901760
    %v2714 = vsub.f32 %v145, %v2713
    %v2715 = vand.u32 %v2714, 4294901760
    %2716 = vmatpush1.xpose.msra.mxu0 %v2715
    %v2717 = vand.u32 %v148, 4294901760
    %v2718 = vsub.f32 %v148, %v2717
    %v2719 = vand.u32 %v2718, 4294901760
    %2720 = vmatprep.subr.mxu0 %v2719
    %v2721 = vand.u32 %v147, 4294901760
    %v2722 = vsub.f32 %v147, %v2721
    %v2723 = vand.u32 %v2722, 4294901760
    %2724 = vmatpush1.xpose.msra.mxu0 %v2723
    %v2725 = vand.u32 %v150, 4294901760
    %v2726 = vsub.f32 %v150, %v2725
    %v2727 = vand.u32 %v2726, 4294901760
    %2728 = vmatprep.subr.mxu0 %v2727
    %v2729 = vand.u32 %v149, 4294901760
    %v2730 = vsub.f32 %v149, %v2729
    %v2731 = vand.u32 %v2730, 4294901760
    %2732 = vmatpush1.xpose.msra.mxu0 %v2731
    %v2733 = vand.u32 %v152, 4294901760
    %v2734 = vsub.f32 %v152, %v2733
    %v2735 = vand.u32 %v2734, 4294901760
    %2736 = vmatprep.subr.mxu0 %v2735
    %v2737 = vand.u32 %v151, 4294901760
    %v2738 = vsub.f32 %v151, %v2737
    %v2739 = vand.u32 %v2738, 4294901760
    %2740 = vmatpush1.xpose.msra.mxu0 %v2739
    %v2741 = vand.u32 %v154, 4294901760
    %v2742 = vsub.f32 %v154, %v2741
    %v2743 = vand.u32 %v2742, 4294901760
    %2744 = vmatprep.subr.mxu0 %v2743
    %v2745 = vand.u32 %v153, 4294901760
    %v2746 = vsub.f32 %v153, %v2745
    %v2747 = vand.u32 %v2746, 4294901760
    %2748 = vmatpush1.xpose.msra.mxu0 %v2747
    %v2749 = vand.u32 %v156, 4294901760
    %v2750 = vsub.f32 %v156, %v2749
    %v2751 = vand.u32 %v2750, 4294901760
    %2752 = vmatprep.subr.mxu0 %v2751
    %v2753 = vand.u32 %v155, 4294901760
    %v2754 = vsub.f32 %v155, %v2753
    %v2755 = vand.u32 %v2754, 4294901760
    %2756 = vmatpush1.xpose.msra.mxu0 %v2755
    %v2757 = vand.u32 %v158, 4294901760
    %v2758 = vsub.f32 %v158, %v2757
    %v2759 = vand.u32 %v2758, 4294901760
    %2760 = vmatprep.subr.mxu0 %v2759
    %v2761 = vand.u32 %v157, 4294901760
    %v2762 = vsub.f32 %v157, %v2761
    %v2763 = vand.u32 %v2762, 4294901760
    %2764 = vmatpush1.xpose.msra.mxu0 %v2763
    %v2765 = vand.u32 %v160, 4294901760
    %v2766 = vsub.f32 %v160, %v2765
    %v2767 = vand.u32 %v2766, 4294901760
    %2768 = vmatprep.subr.mxu0 %v2767
    %v2769 = vand.u32 %v159, 4294901760
    %v2770 = vsub.f32 %v159, %v2769
    %v2771 = vand.u32 %v2770, 4294901760
    %2772 = vmatpush1.xpose.msra.mxu0 %v2771
    %v2773 = vand.u32 %v162, 4294901760
    %v2774 = vsub.f32 %v162, %v2773
    %v2775 = vand.u32 %v2774, 4294901760
    %2776 = vmatprep.subr.mxu0 %v2775
    %v2777 = vand.u32 %v161, 4294901760
    %v2778 = vsub.f32 %v161, %v2777
    %v2779 = vand.u32 %v2778, 4294901760
    %2780 = vmatpush1.xpose.msra.mxu0 %v2779
    %v2781 = vand.u32 %v164, 4294901760
    %v2782 = vsub.f32 %v164, %v2781
    %v2783 = vand.u32 %v2782, 4294901760
    %2784 = vmatprep.subr.mxu0 %v2783
    %v2785 = vand.u32 %v163, 4294901760
    %v2786 = vsub.f32 %v163, %v2785
    %v2787 = vand.u32 %v2786, 4294901760
    %2788 = vmatpush1.xpose.msra.mxu0 %v2787
    %v2789 = vand.u32 %v166, 4294901760
    %v2790 = vsub.f32 %v166, %v2789
    %v2791 = vand.u32 %v2790, 4294901760
    %2792 = vmatprep.subr.mxu0 %v2791
    %v2793 = vand.u32 %v165, 4294901760
    %v2794 = vsub.f32 %v165, %v2793
    %v2795 = vand.u32 %v2794, 4294901760
    %2796 = vmatpush1.xpose.msra.mxu0 %v2795
    %v2797 = vand.u32 %v168, 4294901760
    %v2798 = vsub.f32 %v168, %v2797
    %v2799 = vand.u32 %v2798, 4294901760
    %2800 = vmatprep.subr.mxu0 %v2799
    %v2801 = vand.u32 %v167, 4294901760
    %v2802 = vsub.f32 %v167, %v2801
    %v2803 = vand.u32 %v2802, 4294901760
    %2804 = vmatpush1.xpose.msra.mxu0 %v2803
    %v2805 = vand.u32 %v170, 4294901760
    %v2806 = vsub.f32 %v170, %v2805
    %v2807 = vand.u32 %v2806, 4294901760
    %2808 = vmatprep.subr.mxu0 %v2807
    %v2809 = vand.u32 %v169, 4294901760
    %v2810 = vsub.f32 %v169, %v2809
    %v2811 = vand.u32 %v2810, 4294901760
    %2812 = vmatpush1.xpose.msra.mxu0 %v2811
    %v2813 = vand.u32 %v172, 4294901760
    %v2814 = vsub.f32 %v172, %v2813
    %v2815 = vand.u32 %v2814, 4294901760
    %2816 = vmatprep.subr.mxu0 %v2815
    %v2817 = vand.u32 %v171, 4294901760
    %v2818 = vsub.f32 %v171, %v2817
    %v2819 = vand.u32 %v2818, 4294901760
    %2820 = vmatpush1.xpose.msra.mxu0 %v2819
    %v2821 = vand.u32 %v174, 4294901760
    %v2822 = vsub.f32 %v174, %v2821
    %v2823 = vand.u32 %v2822, 4294901760
    %2824 = vmatprep.subr.mxu0 %v2823
    %v2825 = vand.u32 %v173, 4294901760
    %v2826 = vsub.f32 %v173, %v2825
    %v2827 = vand.u32 %v2826, 4294901760
    %2828 = vmatpush1.xpose.msra.mxu0 %v2827
    %v2829 = vand.u32 %v176, 4294901760
    %v2830 = vsub.f32 %v176, %v2829
    %v2831 = vand.u32 %v2830, 4294901760
    %2832 = vmatprep.subr.mxu0 %v2831
    %v2833 = vand.u32 %v175, 4294901760
    %v2834 = vsub.f32 %v175, %v2833
    %v2835 = vand.u32 %v2834, 4294901760
    %2836 = vmatpush1.xpose.msra.mxu0 %v2835
    %v2837 = vand.u32 %v44, 4294901760
    %2838 = vmatprep.mubr.f32.mxu0 %v2837
    %v2839 = vand.u32 %v43, 4294901760
    %2840 = vmatmul.mubr.f32.gmra.mrb[0].mxu0 %v2839
    %v2841 = vpop.f32.mrb[0].mxu0
    %v2842 = vadd.f32 %v2553, %v2841
    %v2843 = vpop.f32.mrb[0].mxu0
    %v2844 = vadd.f32 %v2555, %v2843
    %v2845 = vand.u32 %v46, 4294901760
    %2846 = vmatprep.mubr.f32.mxu0 %v2845
    %v2847 = vand.u32 %v45, 4294901760
    %2848 = vmatmul.mubr.f32.gmra.mrb[0].mxu0 %v2847
    %v2849 = vpop.f32.mrb[0].mxu0
    %v2850 = vadd.f32 %v2565, %v2849
    %v2851 = vpop.f32.mrb[0].mxu0
    %v2852 = vadd.f32 %v2567, %v2851
    %v2853 = vand.u32 %v48, 4294901760
    %2854 = vmatprep.mubr.f32.mxu0 %v2853
    %v2855 = vand.u32 %v47, 4294901760
    %2856 = vmatmul.mubr.f32.gmra.mrb[0].mxu0 %v2855
    %v2857 = vpop.f32.mrb[0].mxu0
    %v2858 = vadd.f32 %v2577, %v2857
    %v2859 = vpop.f32.mrb[0].mxu0
    %v2860 = vadd.f32 %v2579, %v2859
    %2861 = vdwg.mxu0
    %v2862 = vand.u32 %v114, 4294901760
    %2863 = vmatprep.subr.mxu0 %v2862
    %v2864 = vand.u32 %v113, 4294901760
    %2865 = vmatpush1.xpose.msra.mxu0 %v2864
    %v2866 = vand.u32 %v116, 4294901760
    %2867 = vmatprep.subr.mxu0 %v2866
    %v2868 = vand.u32 %v115, 4294901760
    %2869 = vmatpush1.xpose.msra.mxu0 %v2868
    %v2870 = vand.u32 %v118, 4294901760
    %2871 = vmatprep.subr.mxu0 %v2870
    %v2872 = vand.u32 %v117, 4294901760
    %2873 = vmatpush1.xpose.msra.mxu0 %v2872
    %v2874 = vand.u32 %v120, 4294901760
    %2875 = vmatprep.subr.mxu0 %v2874
    %v2876 = vand.u32 %v119, 4294901760
    %2877 = vmatpush1.xpose.msra.mxu0 %v2876
    %v2878 = vand.u32 %v122, 4294901760
    %2879 = vmatprep.subr.mxu0 %v2878
    %v2880 = vand.u32 %v121, 4294901760
    %2881 = vmatpush1.xpose.msra.mxu0 %v2880
    %v2882 = vand.u32 %v124, 4294901760
    %2883 = vmatprep.subr.mxu0 %v2882
    %v2884 = vand.u32 %v123, 4294901760
    %2885 = vmatpush1.xpose.msra.mxu0 %v2884
    %v2886 = vand.u32 %v126, 4294901760
    %2887 = vmatprep.subr.mxu0 %v2886
    %v2888 = vand.u32 %v125, 4294901760
    %2889 = vmatpush1.xpose.msra.mxu0 %v2888
    %v2890 = vand.u32 %v128, 4294901760
    %2891 = vmatprep.subr.mxu0 %v2890
    %v2892 = vand.u32 %v127, 4294901760
    %2893 = vmatpush1.xpose.msra.mxu0 %v2892
    %v2894 = vand.u32 %v130, 4294901760
    %2895 = vmatprep.subr.mxu0 %v2894
    %v2896 = vand.u32 %v129, 4294901760
    %2897 = vmatpush1.xpose.msra.mxu0 %v2896
    %v2898 = vand.u32 %v132, 4294901760
    %2899 = vmatprep.subr.mxu0 %v2898
    %v2900 = vand.u32 %v131, 4294901760
    %2901 = vmatpush1.xpose.msra.mxu0 %v2900
    %v2902 = vand.u32 %v134, 4294901760
    %2903 = vmatprep.subr.mxu0 %v2902
    %v2904 = vand.u32 %v133, 4294901760
    %2905 = vmatpush1.xpose.msra.mxu0 %v2904
    %v2906 = vand.u32 %v136, 4294901760
    %2907 = vmatprep.subr.mxu0 %v2906
    %v2908 = vand.u32 %v135, 4294901760
    %2909 = vmatpush1.xpose.msra.mxu0 %v2908
    %v2910 = vand.u32 %v138, 4294901760
    %2911 = vmatprep.subr.mxu0 %v2910
    %v2912 = vand.u32 %v137, 4294901760
    %2913 = vmatpush1.xpose.msra.mxu0 %v2912
    %v2914 = vand.u32 %v140, 4294901760
    %2915 = vmatprep.subr.mxu0 %v2914
    %v2916 = vand.u32 %v139, 4294901760
    %2917 = vmatpush1.xpose.msra.mxu0 %v2916
    %v2918 = vand.u32 %v142, 4294901760
    %2919 = vmatprep.subr.mxu0 %v2918
    %v2920 = vand.u32 %v141, 4294901760
    %2921 = vmatpush1.xpose.msra.mxu0 %v2920
    %v2922 = vand.u32 %v144, 4294901760
    %2923 = vmatprep.subr.mxu0 %v2922
    %v2924 = vand.u32 %v143, 4294901760
    %2925 = vmatpush1.xpose.msra.mxu0 %v2924
    %v2926 = vand.u32 %v146, 4294901760
    %2927 = vmatprep.subr.mxu0 %v2926
    %v2928 = vand.u32 %v145, 4294901760
    %2929 = vmatpush1.xpose.msra.mxu0 %v2928
    %v2930 = vand.u32 %v148, 4294901760
    %2931 = vmatprep.subr.mxu0 %v2930
    %v2932 = vand.u32 %v147, 4294901760
    %2933 = vmatpush1.xpose.msra.mxu0 %v2932
    %v2934 = vand.u32 %v150, 4294901760
    %2935 = vmatprep.subr.mxu0 %v2934
    %v2936 = vand.u32 %v149, 4294901760
    %2937 = vmatpush1.xpose.msra.mxu0 %v2936
    %v2938 = vand.u32 %v152, 4294901760
    %2939 = vmatprep.subr.mxu0 %v2938
    %v2940 = vand.u32 %v151, 4294901760
    %2941 = vmatpush1.xpose.msra.mxu0 %v2940
    %v2942 = vand.u32 %v154, 4294901760
    %2943 = vmatprep.subr.mxu0 %v2942
    %v2944 = vand.u32 %v153, 4294901760
    %2945 = vmatpush1.xpose.msra.mxu0 %v2944
    %v2946 = vand.u32 %v156, 4294901760
    %2947 = vmatprep.subr.mxu0 %v2946
    %v2948 = vand.u32 %v155, 4294901760
    %2949 = vmatpush1.xpose.msra.mxu0 %v2948
    %v2950 = vand.u32 %v158, 4294901760
    %2951 = vmatprep.subr.mxu0 %v2950
    %v2952 = vand.u32 %v157, 4294901760
    %2953 = vmatpush1.xpose.msra.mxu0 %v2952
    %v2954 = vand.u32 %v160, 4294901760
    %2955 = vmatprep.subr.mxu0 %v2954
    %v2956 = vand.u32 %v159, 4294901760
    %2957 = vmatpush1.xpose.msra.mxu0 %v2956
    %v2958 = vand.u32 %v162, 4294901760
    %2959 = vmatprep.subr.mxu0 %v2958
    %v2960 = vand.u32 %v161, 4294901760
    %2961 = vmatpush1.xpose.msra.mxu0 %v2960
    %v2962 = vand.u32 %v164, 4294901760
    %2963 = vmatprep.subr.mxu0 %v2962
    %v2964 = vand.u32 %v163, 4294901760
    %2965 = vmatpush1.xpose.msra.mxu0 %v2964
    %v2966 = vand.u32 %v166, 4294901760
    %2967 = vmatprep.subr.mxu0 %v2966
    %v2968 = vand.u32 %v165, 4294901760
    %2969 = vmatpush1.xpose.msra.mxu0 %v2968
    %v2970 = vand.u32 %v168, 4294901760
    %2971 = vmatprep.subr.mxu0 %v2970
    %v2972 = vand.u32 %v167, 4294901760
    %2973 = vmatpush1.xpose.msra.mxu0 %v2972
    %v2974 = vand.u32 %v170, 4294901760
    %2975 = vmatprep.subr.mxu0 %v2974
    %v2976 = vand.u32 %v169, 4294901760
    %2977 = vmatpush1.xpose.msra.mxu0 %v2976
    %v2978 = vand.u32 %v172, 4294901760
    %2979 = vmatprep.subr.mxu0 %v2978
    %v2980 = vand.u32 %v171, 4294901760
    %2981 = vmatpush1.xpose.msra.mxu0 %v2980
    %v2982 = vand.u32 %v174, 4294901760
    %2983 = vmatprep.subr.mxu0 %v2982
    %v2984 = vand.u32 %v173, 4294901760
    %2985 = vmatpush1.xpose.msra.mxu0 %v2984
    %v2986 = vand.u32 %v176, 4294901760
    %2987 = vmatprep.subr.mxu0 %v2986
    %v2988 = vand.u32 %v175, 4294901760
    %2989 = vmatpush1.xpose.msra.mxu0 %v2988
    %v2990 = vand.u32 %v44, 4294901760
    %2991 = vmatprep.mubr.f32.mxu0 %v2990
    %v2992 = vand.u32 %v43, 4294901760
    %2993 = vmatmul.mubr.f32.gmra.mrb[0].mxu0 %v2992
    %v2994 = vpop.f32.mrb[0].mxu0
    %v2995 = vadd.f32 %v2842, %v2994
    %v2996 = vpop.f32.mrb[0].mxu0
    %v2997 = vadd.f32 %v2844, %v2996
    %v2998 = vand.u32 %v46, 4294901760
    %2999 = vmatprep.mubr.f32.mxu0 %v2998
    %v3000 = vand.u32 %v45, 4294901760
    %3001 = vmatmul.mubr.f32.gmra.mrb[0].mxu0 %v3000
    %v3002 = vpop.f32.mrb[0].mxu0
    %v3003 = vadd.f32 %v2850, %v3002
    %v3004 = vpop.f32.mrb[0].mxu0
    %v3005 = vadd.f32 %v2852, %v3004
    %v3006 = vand.u32 %v48, 4294901760
    %3007 = vmatprep.mubr.f32.mxu0 %v3006
    %v3008 = vand.u32 %v47, 4294901760
    %3009 = vmatmul.mubr.f32.gmra.mrb[0].mxu0 %v3008
    %v3010 = vpop.f32.mrb[0].mxu0
    %v3011 = vadd.f32 %v2858, %v3010
    %v3012 = vpop.f32.mrb[0].mxu0
    %v3013 = vadd.f32 %v2860, %v3012
    %3014 = vdwg.mxu0
    %3015 = vst [vmem:[#allocation7] sm:$0xff] %v1587
    %3016 = vst [vmem:[#allocation7 + $0x8] sm:$0xff] %v1589
    %3017 = vst [vmem:[#allocation7 + $0x10] sm:$0xff] %v2995
    %3018 = vst [vmem:[#allocation7 + $0x18] sm:$0xff] %v2997
    %3019 = vst [vmem:[#allocation7 + $0x20] sm:$0xff] %v1595
    %3020 = vst [vmem:[#allocation7 + $0x28] sm:$0xff] %v1597
    %3021 = vst [vmem:[#allocation7 + $0x30] sm:$0xff] %v3003
    %3022 = vst [vmem:[#allocation7 + $0x38] sm:$0xff] %v3005
    %3023 = vst [vmem:[#allocation7 + $0x40] sm:$0xff] %v1603
    %3024 = vst [vmem:[#allocation7 + $0x48] sm:$0xff] %v1605
    %3025 = vst [vmem:[#allocation7 + $0x50] sm:$0xff] %v3011
    %3026 = vst [vmem:[#allocation7 + $0x58] sm:$0xff] %v3013
    // Predicated region
    $region22: #{tpu_custom_call.1} parent=1 // pred_check
      _
    $region23: #{tpu_custom_call.1} parent=1 // pred_check_branch
      %3028 = sbr.rel (0) target = $region25
    $region24: #{tpu_custom_call.1} parent=1 // pred_region
      %s3030 = ssub.s32 1536, 1536
      %3031 = vsyncadd [#allocation4], %s3030
      %s3032 = sshll.u32 [#allocation7], 4
      %s3033 = int_to_ptr.vmem [resolvable:$true] %s3032
      %3038 = dma.vmem_to_hbm [thread:$0]  %s3033, 1536, %s3, [#allocation4], 512, 512, 32
    $region25: #{tpu_custom_call.1} parent=1 // pred_fallthru
      _
    // Predicated region
    $region26: #{tpu_custom_call.1} parent=1 // pred_check
      _
    $region27: #{tpu_custom_call.1} parent=1 // pred_check_branch
      %3040 = sbr.rel (0) target = $region29
    $region28: #{tpu_custom_call.1} parent=1 // pred_region
      %3041 = dma.done [#allocation4], 1536
    $region29: #{tpu_custom_call.1} parent=1 // pred_fallthru
      _
    %3042 = vsyncpa [#allocation3], 1
    %3043 = vsyncpa [#allocation6], 1
    %3044 = vsyncpa [#allocation4], 1

</llo_original>
